<compile_context>
chip_gen: v7x
topology: tpu7x:2x2x1
jax: 0.10.0
libtpu: 0.0.40
codegen_flags: <defaults>
</compile_context>

<pallas_src>
import math
from functools import partial

import jax
import jax.numpy as jnp
from jax.experimental import pallas as pl
from jax.experimental.pallas import tpu as pltpu


# ----------------------------- in-kernel helpers ------------------------------

def _layernorm(x, g, b, eps=1e-5):
    mu = jnp.mean(x, axis=-1, keepdims=True)
    var = jnp.mean((x - mu) ** 2, axis=-1, keepdims=True)
    return (x - mu) * jax.lax.rsqrt(var + eps) * g + b


# ----------------------------- fused per-layer kernel -------------------------

def make_forward_kernel(num_heads):
    H = num_heads

    def kernel(tok_ref, pos_ref,
               wqkv_ref, bqkv_ref, wo_ref, bo_ref,
               g1_ref, b1_ref, g2_ref, b2_ref,
               w1_ref, bb1_ref, w2_ref, bb2_ref,
               lmw_ref, lmb_ref, o_ref, x_ref):
        l = pl.program_id(0)
        B, S, E = tok_ref.shape
        BS = B * S
        Dh = E // H

        # ---- first grid step: fused embedding add; fold batch into the sublane axis ----
        @pl.when(l == 0)
        def _():
            x_ref[...] = (tok_ref[...] + pos_ref[...]).reshape(BS, E)

        x = x_ref[...]                                   # (BS, E) f32 resident activations

        # ---------------- multi-head self-attention ----------------
        xb = x.astype(jnp.bfloat16)
        # combined in-proj; 1/sqrt(Dh) pre-folded into the q columns of wqkv / bqkv
        qkv = jnp.dot(xb, wqkv_ref[...],
                      preferred_element_type=jnp.float32) + bqkv_ref[...]     # (BS, 3E) f32

        # head- and batch-major operands (H*B, S, Dh): per-(head,batch) attention so no
        # cross-batch scores are computed or masked away.
        # TODO(synk): replace the per-head slice+stack with a single reshape +
        # pltpu.einshape relayout once that pattern is validated on this Mosaic version.
        def to_heads(t):
            return jnp.stack(
                [t[:, h * Dh:(h + 1) * Dh].reshape(B, S, Dh) for h in range(H)], axis=0
            ).reshape(H * B, S, Dh).astype(jnp.bfloat16)

        qh = to_heads(qkv[:, 0 * E:1 * E])
        kh = to_heads(qkv[:, 1 * E:2 * E])
        vh = to_heads(qkv[:, 2 * E:3 * E])

        s = jnp.einsum('nqd,nkd->nqk', qh, kh,
                       preferred_element_type=jnp.float32)                    # (H*B, S, S) f32
        r = jax.lax.broadcasted_iota(jnp.int32, (S, S), 0)
        c = jax.lax.broadcasted_iota(jnp.int32, (S, S), 1)
        s = jnp.where(c <= r, s, -1e30)                                       # causal mask (f32)
        m = jnp.max(s, axis=-1, keepdims=True)
        p = jnp.exp(s - m)
        denom = jnp.sum(p, axis=-1, keepdims=True)

        # deferred softmax normalization: PV on unnormalized p, then scale the (H*B,S,Dh)
        # output (not the (H*B,S,S) score slab) in f32; reciprocal uses the EUP slot.
        o = jnp.einsum('nqk,nkd->nqd', p.astype(jnp.bfloat16), vh,
                       preferred_element_type=jnp.float32)                    # (H*B, S, Dh) f32
        o = o * pl.reciprocal(denom, approx=True)

        # concat heads back along lanes -> (BS, E), then ONE out-proj matmul (K = E)
        cat = jnp.concatenate(
            [o[h * B:(h + 1) * B].reshape(BS, Dh) for h in range(H)], axis=-1)
        attn = jnp.dot(cat.astype(jnp.bfloat16), wo_ref[...],
                       preferred_element_type=jnp.float32) + bo_ref[...]      # (BS, E) f32

        # TODO(synk): dropout is identity (inference / p=0); key_padding_mask=None not applied.
        x = _layernorm(x + attn, g1_ref[...], b1_ref[...])

        # ---------------- feed-forward ----------------
        ff = jnp.dot(x.astype(jnp.bfloat16), w1_ref[...],
                     preferred_element_type=jnp.float32) + bb1_ref[...]
        ff = jnp.maximum(ff, 0.0)
        ff = jnp.dot(ff.astype(jnp.bfloat16), w2_ref[...],
                     preferred_element_type=jnp.float32) + bb2_ref[...]
        x = _layernorm(x + ff, g2_ref[...], b2_ref[...])

        x_ref[...] = x

        # ---------------- lm head on the last layer only ----------------
        # TODO(synk): at production vocab sizes, tile V with an extra ("parallel") grid axis
        # so the (E,V) weight streams and the second TensorCore on v7x is used.
        # TODO(synk): for long sequences, switch attention to a KV-tiled flash-style loop
        # instead of materializing the full (H*B, S, S) score matrix.
        @pl.when(l == pl.num_programs(0) - 1)
        def _():
            o_ref[...] = jnp.dot(x.astype(jnp.bfloat16), lmw_ref[...],
                                 preferred_element_type=jnp.float32) + lmb_ref[...]

    return kernel


# ----------------------------- parameter init & prep --------------------------

def init_params(key, vocab_size, embed_size, num_layers, forward_expansion, max_length):
    """PyTorch-convention parameters: Linear weight [out, in], applied as x @ W.T + b."""
    E = embed_size
    Hff = forward_expansion * E
    keys = jax.random.split(key, 4 + 6 * num_layers)
    k_iter = iter(keys)
    std = 0.02

    params = {
        "token_emb": std * jax.random.normal(next(k_iter), (vocab_size, E), jnp.float32),
        "pos_emb":   std * jax.random.normal(next(k_iter), (max_length, E), jnp.float32),
        "lm_w":      std * jax.random.normal(next(k_iter), (vocab_size, E), jnp.float32),
        "lm_b":      jnp.zeros((1, vocab_size), jnp.float32),
        "blocks":    [],
    }
    for _ in range(num_layers):
        blk = (
            std * jax.random.normal(next(k_iter), (3 * E, E), jnp.float32),   # wqkv  [out,in]
            jnp.zeros((1, 3 * E), jnp.float32),                               # bqkv
            std * jax.random.normal(next(k_iter), (E, E), jnp.float32),       # wo    [out,in]
            jnp.zeros((1, E), jnp.float32),                                   # bo
            jnp.ones((1, E), jnp.float32),                                    # ln1 gamma
            jnp.zeros((1, E), jnp.float32),                                   # ln1 beta
            jnp.ones((1, E), jnp.float32),                                    # ln2 gamma
            jnp.zeros((1, E), jnp.float32),                                   # ln2 beta
            std * jax.random.normal(next(k_iter), (Hff, E), jnp.float32),     # ffn w1 [out,in]
            jnp.zeros((1, Hff), jnp.float32),                                 # ffn b1
            std * jax.random.normal(next(k_iter), (E, Hff), jnp.float32),     # ffn w2 [out,in]
            jnp.zeros((1, E), jnp.float32),                                   # ffn b2
        )
        params["blocks"].append(blk)
    return params


def prepare_params(params, num_heads):
    """Run ONCE at init (hoisted out of the forward).

    Pre-transposes ([out,in] -> [in,out]), stacks per-layer weights over a leading L axis,
    folds 1/sqrt(Dh) into the q columns of the fused QKV projection, casts matmul weights
    to bf16, and pads the lm head to a lane-dense 128-multiple vocab."""
    blocks = params["blocks"]
    E = params["token_emb"].shape[1]
    Dh = E // num_heads
    scale = 1.0 / math.sqrt(Dh)

    def stack(i):
        return jnp.stack([blk[i] for blk in blocks], axis=0)

    # fused qkv in-proj with the attention scale folded into q (weight + bias, in f32)
    qscale = jnp.concatenate([jnp.full((3 * E,), 1.0, jnp.float32).at[:E].set(scale)], 0)
    wqkv_t = (jnp.stack([blk[0].T for blk in blocks], 0) * qscale).astype(jnp.bfloat16)  # (L,E,3E)
    bqkv = stack(1) * qscale                                                             # (L,1,3E)

    wo_t = jnp.stack([blk[2].T for blk in blocks], 0).astype(jnp.bfloat16)               # (L,E,E)
    bo = stack(3)                                                                        # (L,1,E)
    g1, b1, g2, b2 = stack(4), stack(5), stack(6), stack(7)                              # (L,1,E)
    w1_t = jnp.stack([blk[8].T for blk in blocks], 0).astype(jnp.bfloat16)               # (L,E,Hff)
    bb1 = stack(9)                                                                       # (L,1,Hff)
    w2_t = jnp.stack([blk[10].T for blk in blocks], 0).astype(jnp.bfloat16)              # (L,Hff,E)
    bb2 = stack(11)                                                                      # (L,1,E)

    # lm head padded to a multiple of 128 along V for unmasked lane-dense stores
    V = params["lm_w"].shape[0]
    Vp = ((V + 127) // 128) * 128
    lm_w_t = jnp.pad(params["lm_w"].T, ((0, 0), (0, Vp - V))).astype(jnp.bfloat16)       # (E,Vp)
    lm_b = jnp.pad(params["lm_b"], ((0, 0), (0, Vp - V)))                                # (1,Vp)
    return (wqkv_t, bqkv, wo_t, bo, g1, b1, g2, b2, w1_t, bb1, w2_t, bb2, lm_w_t, lm_b)


# ----------------------------- forward ----------------------------------------

@partial(jax.jit, static_argnames=("num_heads", "vocab_size"))
def transformer_forward(token_ids, token_emb, pos_emb, prepped, *, num_heads, vocab_size):
    B, S = token_ids.shape
    E = token_emb.shape[1]
    L = prepped[0].shape[0]
    Hff = prepped[8].shape[2]
    Vp = prepped[12].shape[1]
    BS = B * S

    # TODO(synk): at production B*S*E, gather token embeddings inside the kernel via
    # PrefetchScalarGridSpec scalar-prefetch of token ids instead of a (B,S,E) HBM round-trip.
    tok = token_emb[token_ids].astype(jnp.float32)     # (B, S, E)
    pos = pos_emb[:S].astype(jnp.float32)              # (S, E)

    def layer_w(shape):   # per-layer weight, streamed along the layer grid axis
        return pl.BlockSpec((None,) + shape, lambda l: (l, 0, 0))

    in_specs = [
        pl.BlockSpec((B, S, E), lambda l: (0, 0, 0)),   # tok (constant block -> fetched once)
        pl.BlockSpec((S, E), lambda l: (0, 0)),         # pos
        layer_w((E, 3 * E)),                            # wqkv
        layer_w((1, 3 * E)),                            # bqkv
        layer_w((E, E)),                                # wo
        layer_w((1, E)),                                # bo
        layer_w((1, E)), layer_w((1, E)),               # ln1 gamma / beta
        layer_w((1, E)), layer_w((1, E)),               # ln2 gamma / beta
        layer_w((E, Hff)),                              # ffn w1
        layer_w((1, Hff)),                              # ffn b1
        layer_w((Hff, E)),                              # ffn w2
        layer_w((1, E)),                                # ffn b2
        pl.BlockSpec((E, Vp), lambda l: (0, 0)),        # lm head weight (fetched once)
        pl.BlockSpec((1, Vp), lambda l: (0, 0)),        # lm head bias
    ]
    out_spec = pl.BlockSpec((BS, Vp), lambda l: (0, 0))  # resident across layers, written last

    logits = pl.pallas_call(
        make_forward_kernel(num_heads),
        grid=(L,),
        in_specs=in_specs,
        out_specs=out_spec,
        out_shape=jax.ShapeDtypeStruct((BS, Vp), jnp.float32),
        scratch_shapes=[pltpu.VMEM((BS, E), jnp.float32)],     # resident activations
        compiler_params=pltpu.CompilerParams(
            dimension_semantics=("arbitrary",)),               # layers are sequential
    )(tok, pos, *prepped)

    return logits[:, :vocab_size].reshape(B, S, vocab_size)


# ----------------------------- main --------------------------------------------

if __name__ == "__main__":
    vocab_size = 64
    embed_size = 32
    num_layers = 2
    num_heads = 4
    forward_expansion = 4
    max_length = 16
    B, S = 2, 8

    key = jax.random.PRNGKey(0)
    k_param, k_tok = jax.random.split(key)
    params = init_params(k_param, vocab_size, embed_size, num_layers,
                         forward_expansion, max_length)
    # prepare_params is hoisted out of the forward: run once, reuse the prepped pytree.
    prepped = prepare_params(params, num_heads)
    token_ids = jax.random.randint(k_tok, (B, S), 0, vocab_size, dtype=jnp.int32)

    logits = transformer_forward(token_ids, params["token_emb"], params["pos_emb"],
                                 prepped, num_heads=num_heads, vocab_size=vocab_size)
    logits = jax.block_until_ready(logits)
    assert logits.shape == (B, S, vocab_size)
    assert bool(jnp.all(jnp.isfinite(logits)))
    print("KERNEL_OK")
</pallas_src>

<mosaic_0001>
module attributes {stable_mosaic.version = 11 : i64} {
  func.func @kernel(%arg0: i32, %arg1: memref<2x8x32xf32, #tpu.memory_space<vmem>>, %arg2: memref<8x32xf32, #tpu.memory_space<vmem>>, %arg3: memref<1x32x96xbf16, #tpu.memory_space<vmem>>, %arg4: memref<1x1x96xf32, #tpu.memory_space<vmem>>, %arg5: memref<1x32x32xbf16, #tpu.memory_space<vmem>>, %arg6: memref<1x1x32xf32, #tpu.memory_space<vmem>>, %arg7: memref<1x1x32xf32, #tpu.memory_space<vmem>>, %arg8: memref<1x1x32xf32, #tpu.memory_space<vmem>>, %arg9: memref<1x1x32xf32, #tpu.memory_space<vmem>>, %arg10: memref<1x1x32xf32, #tpu.memory_space<vmem>>, %arg11: memref<1x32x128xbf16, #tpu.memory_space<vmem>>, %arg12: memref<1x1x128xf32, #tpu.memory_space<vmem>>, %arg13: memref<1x128x32xbf16, #tpu.memory_space<vmem>>, %arg14: memref<1x1x32xf32, #tpu.memory_space<vmem>>, %arg15: memref<32x128xbf16, #tpu.memory_space<vmem>>, %arg16: memref<1x128xf32, #tpu.memory_space<vmem>>, %arg17: memref<16x128xf32, #tpu.memory_space<vmem>>, %arg18: memref<16x32xf32, #tpu.memory_space<vmem>>) attributes {dimension_semantics = [#tpu.dimension_semantics<arbitrary>], iteration_bounds = array<i64: 2>, scalar_prefetch = 0 : i64, scratch_operands = 1 : i64, tpu.core_type = #tpu.core_type<tc>, window_params = [{pipeline_mode = #tpu.pipeline_mode<synchronous>, transform_indices = @transform_0, window_bounds = array<i64: 2, 8, 32>}, {pipeline_mode = #tpu.pipeline_mode<synchronous>, transform_indices = @transform_1, window_bounds = array<i64: 8, 32>}, {transform_indices = @transform_2, window_bounds = array<i64: 1, 32, 96>}, {transform_indices = @transform_3, window_bounds = array<i64: 1, 1, 96>}, {transform_indices = @transform_4, window_bounds = array<i64: 1, 32, 32>}, {transform_indices = @transform_5, window_bounds = array<i64: 1, 1, 32>}, {transform_indices = @transform_6, window_bounds = array<i64: 1, 1, 32>}, {transform_indices = @transform_7, window_bounds = array<i64: 1, 1, 32>}, {transform_indices = @transform_8, window_bounds = array<i64: 1, 1, 32>}, {transform_indices = @transform_9, window_bounds = array<i64: 1, 1, 32>}, {transform_indices = @transform_10, window_bounds = array<i64: 1, 32, 128>}, {transform_indices = @transform_11, window_bounds = array<i64: 1, 1, 128>}, {transform_indices = @transform_12, window_bounds = array<i64: 1, 128, 32>}, {transform_indices = @transform_13, window_bounds = array<i64: 1, 1, 32>}, {pipeline_mode = #tpu.pipeline_mode<synchronous>, transform_indices = @transform_14, window_bounds = array<i64: 32, 128>}, {pipeline_mode = #tpu.pipeline_mode<synchronous>, transform_indices = @transform_15, window_bounds = array<i64: 1, 128>}, {pipeline_mode = #tpu.pipeline_mode<synchronous>, transform_indices = @transform_16, window_bounds = array<i64: 16, 128>}]} {
    %c0_i32 = arith.constant 0 : i32
    %0 = arith.cmpi eq, %arg0, %c0_i32 : i32
    %1 = arith.extui %0 : i1 to i32
    %c0_i32_0 = arith.constant 0 : i32
    %2 = arith.cmpi ne, %1, %c0_i32_0 : i32
    scf.if %2 {
      %c0_60 = arith.constant 0 : index
      %c0_61 = arith.constant 0 : index
      %c0_62 = arith.constant 0 : index
      %173 = vector.load %arg1[%c0_60, %c0_61, %c0_62] : memref<2x8x32xf32, #tpu.memory_space<vmem>>, vector<2x8x32xf32>
      %c0_63 = arith.constant 0 : index
      %c0_64 = arith.constant 0 : index
      %174 = vector.load %arg2[%c0_63, %c0_64] : memref<8x32xf32, #tpu.memory_space<vmem>>, vector<8x32xf32>
      %175 = vector.shape_cast %174 : vector<8x32xf32> to vector<1x8x32xf32>
      %176 = vector.broadcast %175 : vector<1x8x32xf32> to vector<2x8x32xf32>
      %177 = arith.addf %173, %176 : vector<2x8x32xf32>
      %178 = vector.shape_cast %177 : vector<2x8x32xf32> to vector<16x32xf32>
      %c0_65 = arith.constant 0 : index
      %c0_66 = arith.constant 0 : index
      %179 = vector.load %arg18[%c0_65, %c0_66] : memref<16x32xf32, #tpu.memory_space<vmem>>, vector<16x32xf32>
      tpu.vector_store %arg18[%c0_65, %c0_66], %178 {strides = array<i32>} : memref<16x32xf32, #tpu.memory_space<vmem>>, vector<16x32xf32>,
    } else {
    }
    %c0 = arith.constant 0 : index
    %c0_1 = arith.constant 0 : index
    %3 = vector.load %arg18[%c0, %c0_1] : memref<16x32xf32, #tpu.memory_space<vmem>>, vector<16x32xf32>
    %4 = arith.truncf %3 : vector<16x32xf32> to vector<16x32xbf16>
    %c0_2 = arith.constant 0 : index
    %c0_3 = arith.constant 0 : index
    %c0_4 = arith.constant 0 : index
    %5 = vector.load %arg3[%c0_2, %c0_3, %c0_4] : memref<1x32x96xbf16, #tpu.memory_space<vmem>>, vector<1x32x96xbf16>
    %6 = vector.shape_cast %5 : vector<1x32x96xbf16> to vector<32x96xbf16>
    %cst = arith.constant dense<0.000000e+00> : vector<16x96xf32>
    %7 = tpu.matmul %4, %6, %cst {dimension_numbers = #tpu.dot_dimension_numbers<[1], [0], [0], [1], [0, 0, 1, 1], [], []>} : vector<16x32xbf16>, vector<32x96xbf16>, vector<16x96xf32> -> vector<16x96xf32>
    %c0_5 = arith.constant 0 : index
    %c0_6 = arith.constant 0 : index
    %c0_7 = arith.constant 0 : index
    %8 = vector.load %arg4[%c0_5, %c0_6, %c0_7] : memref<1x1x96xf32, #tpu.memory_space<vmem>>, vector<1x1x96xf32>
    %9 = vector.shape_cast %8 : vector<1x1x96xf32> to vector<1x96xf32>
    %10 = vector.broadcast %9 : vector<1x96xf32> to vector<16x96xf32>
    %11 = arith.addf %7, %10 : vector<16x96xf32>
    %12 = vector.extract_strided_slice %11 {offsets = [0, 0], sizes = [16, 32], strides = [1, 1]} : vector<16x96xf32> to vector<16x32xf32>
    %13 = vector.extract_strided_slice %12 {offsets = [0, 0], sizes = [16, 8], strides = [1, 1]} : vector<16x32xf32> to vector<16x8xf32>
    %14 = vector.shape_cast %13 : vector<16x8xf32> to vector<2x8x8xf32>
    %15 = vector.extract_strided_slice %12 {offsets = [0, 8], sizes = [16, 8], strides = [1, 1]} : vector<16x32xf32> to vector<16x8xf32>
    %16 = vector.shape_cast %15 : vector<16x8xf32> to vector<2x8x8xf32>
    %17 = vector.extract_strided_slice %12 {offsets = [0, 16], sizes = [16, 8], strides = [1, 1]} : vector<16x32xf32> to vector<16x8xf32>
    %18 = vector.shape_cast %17 : vector<16x8xf32> to vector<2x8x8xf32>
    %19 = vector.extract_strided_slice %12 {offsets = [0, 24], sizes = [16, 8], strides = [1, 1]} : vector<16x32xf32> to vector<16x8xf32>
    %20 = vector.shape_cast %19 : vector<16x8xf32> to vector<2x8x8xf32>
    %21 = vector.shape_cast %14 : vector<2x8x8xf32> to vector<1x2x8x8xf32>
    %22 = vector.shape_cast %16 : vector<2x8x8xf32> to vector<1x2x8x8xf32>
    %23 = vector.shape_cast %18 : vector<2x8x8xf32> to vector<1x2x8x8xf32>
    %24 = vector.shape_cast %20 : vector<2x8x8xf32> to vector<1x2x8x8xf32>
    %25 = tpu.concatenate %21, %22, %23, %24 in 0 : vector<1x2x8x8xf32>, vector<1x2x8x8xf32>, vector<1x2x8x8xf32>, vector<1x2x8x8xf32> -> vector<4x2x8x8xf32>
    %26 = vector.shape_cast %25 : vector<4x2x8x8xf32> to vector<8x8x8xf32>
    %27 = arith.truncf %26 : vector<8x8x8xf32> to vector<8x8x8xbf16>
    %28 = vector.extract_strided_slice %11 {offsets = [0, 32], sizes = [16, 32], strides = [1, 1]} : vector<16x96xf32> to vector<16x32xf32>
    %29 = vector.extract_strided_slice %28 {offsets = [0, 0], sizes = [16, 8], strides = [1, 1]} : vector<16x32xf32> to vector<16x8xf32>
    %30 = vector.shape_cast %29 : vector<16x8xf32> to vector<2x8x8xf32>
    %31 = vector.extract_strided_slice %28 {offsets = [0, 8], sizes = [16, 8], strides = [1, 1]} : vector<16x32xf32> to vector<16x8xf32>
    %32 = vector.shape_cast %31 : vector<16x8xf32> to vector<2x8x8xf32>
    %33 = vector.extract_strided_slice %28 {offsets = [0, 16], sizes = [16, 8], strides = [1, 1]} : vector<16x32xf32> to vector<16x8xf32>
    %34 = vector.shape_cast %33 : vector<16x8xf32> to vector<2x8x8xf32>
    %35 = vector.extract_strided_slice %28 {offsets = [0, 24], sizes = [16, 8], strides = [1, 1]} : vector<16x32xf32> to vector<16x8xf32>
    %36 = vector.shape_cast %35 : vector<16x8xf32> to vector<2x8x8xf32>
    %37 = vector.shape_cast %30 : vector<2x8x8xf32> to vector<1x2x8x8xf32>
    %38 = vector.shape_cast %32 : vector<2x8x8xf32> to vector<1x2x8x8xf32>
    %39 = vector.shape_cast %34 : vector<2x8x8xf32> to vector<1x2x8x8xf32>
    %40 = vector.shape_cast %36 : vector<2x8x8xf32> to vector<1x2x8x8xf32>
    %41 = tpu.concatenate %37, %38, %39, %40 in 0 : vector<1x2x8x8xf32>, vector<1x2x8x8xf32>, vector<1x2x8x8xf32>, vector<1x2x8x8xf32> -> vector<4x2x8x8xf32>
    %42 = vector.shape_cast %41 : vector<4x2x8x8xf32> to vector<8x8x8xf32>
    %43 = arith.truncf %42 : vector<8x8x8xf32> to vector<8x8x8xbf16>
    %44 = vector.extract_strided_slice %11 {offsets = [0, 64], sizes = [16, 32], strides = [1, 1]} : vector<16x96xf32> to vector<16x32xf32>
    %45 = vector.extract_strided_slice %44 {offsets = [0, 0], sizes = [16, 8], strides = [1, 1]} : vector<16x32xf32> to vector<16x8xf32>
    %46 = vector.shape_cast %45 : vector<16x8xf32> to vector<2x8x8xf32>
    %47 = vector.extract_strided_slice %44 {offsets = [0, 8], sizes = [16, 8], strides = [1, 1]} : vector<16x32xf32> to vector<16x8xf32>
    %48 = vector.shape_cast %47 : vector<16x8xf32> to vector<2x8x8xf32>
    %49 = vector.extract_strided_slice %44 {offsets = [0, 16], sizes = [16, 8], strides = [1, 1]} : vector<16x32xf32> to vector<16x8xf32>
    %50 = vector.shape_cast %49 : vector<16x8xf32> to vector<2x8x8xf32>
    %51 = vector.extract_strided_slice %44 {offsets = [0, 24], sizes = [16, 8], strides = [1, 1]} : vector<16x32xf32> to vector<16x8xf32>
    %52 = vector.shape_cast %51 : vector<16x8xf32> to vector<2x8x8xf32>
    %53 = vector.shape_cast %46 : vector<2x8x8xf32> to vector<1x2x8x8xf32>
    %54 = vector.shape_cast %48 : vector<2x8x8xf32> to vector<1x2x8x8xf32>
    %55 = vector.shape_cast %50 : vector<2x8x8xf32> to vector<1x2x8x8xf32>
    %56 = vector.shape_cast %52 : vector<2x8x8xf32> to vector<1x2x8x8xf32>
    %57 = tpu.concatenate %53, %54, %55, %56 in 0 : vector<1x2x8x8xf32>, vector<1x2x8x8xf32>, vector<1x2x8x8xf32>, vector<1x2x8x8xf32> -> vector<4x2x8x8xf32>
    %58 = vector.shape_cast %57 : vector<4x2x8x8xf32> to vector<8x8x8xf32>
    %59 = arith.truncf %58 : vector<8x8x8xf32> to vector<8x8x8xbf16>
    "tpu.trace_start"() <{level = 10 : i32, message = "nqd,nkd->nqk"}> : () -> ()
    %cst_8 = arith.constant dense<0.000000e+00> : vector<8x8x8xf32>
    %60 = tpu.matmul %27, %43, %cst_8 {dimension_numbers = #tpu.dot_dimension_numbers<[2], [2], [1], [1], [0, 0, 0, 1, 1, 1], [0], [0]>} : vector<8x8x8xbf16>, vector<8x8x8xbf16>, vector<8x8x8xf32> -> vector<8x8x8xf32>
    "tpu.trace_stop"() : () -> ()
    %61 = tpu.iota {dimensions = array<i32: 0>} : vector<8x8xi32>
    %62 = tpu.iota {dimensions = array<i32: 1>} : vector<8x8xi32>
    %63 = arith.cmpi sle, %62, %61 : vector<8x8xi32>
    %cst_9 = arith.constant -1.000000e+30 : f32
    %64 = vector.shape_cast %63 : vector<8x8xi1> to vector<1x8x8xi1>
    %65 = vector.broadcast %64 : vector<1x8x8xi1> to vector<8x8x8xi1>
    %66 = vector.broadcast %cst_9 : f32 to vector<8x8x8xf32>
    %67 = arith.select %65, %60, %66 : vector<8x8x8xi1>, vector<8x8x8xf32>
    %cst_10 = arith.constant dense<0xFF800000> : vector<8x8xf32>
    %68 = vector.multi_reduction <maximumf>, %67, %cst_10 [2] : vector<8x8x8xf32> to vector<8x8xf32>
    %69 = vector.shape_cast %68 : vector<8x8xf32> to vector<8x8x1xf32>
    %70 = vector.broadcast %69 : vector<8x8x1xf32> to vector<8x8x8xf32>
    %71 = arith.subf %67, %70 : vector<8x8x8xf32>
    %72 = math.exp %71 : vector<8x8x8xf32>
    %cst_11 = arith.constant dense<0.000000e+00> : vector<8x8xf32>
    %73 = vector.multi_reduction <add>, %72, %cst_11 [2] : vector<8x8x8xf32> to vector<8x8xf32>
    %74 = vector.shape_cast %73 : vector<8x8xf32> to vector<8x8x1xf32>
    %75 = arith.truncf %72 : vector<8x8x8xf32> to vector<8x8x8xbf16>
    "tpu.trace_start"() <{level = 10 : i32, message = "nqk,nkd->nqd"}> : () -> ()
    %cst_12 = arith.constant dense<0.000000e+00> : vector<8x8x8xf32>
    %76 = tpu.matmul %75, %59, %cst_12 {dimension_numbers = #tpu.dot_dimension_numbers<[2], [1], [1], [2], [0, 0, 0, 1, 1, 2], [0], [0]>} : vector<8x8x8xbf16>, vector<8x8x8xbf16>, vector<8x8x8xf32> -> vector<8x8x8xf32>
    "tpu.trace_stop"() : () -> ()
    %77 = tpu.reciprocal %74 {approx = true} : vector<8x8x1xf32> -> vector<8x8x1xf32>
    %78 = vector.broadcast %77 : vector<8x8x1xf32> to vector<8x8x8xf32>
    %79 = arith.mulf %76, %78 : vector<8x8x8xf32>
    %80 = vector.extract_strided_slice %79 {offsets = [0, 0, 0], sizes = [2, 8, 8], strides = [1, 1, 1]} : vector<8x8x8xf32> to vector<2x8x8xf32>
    %81 = vector.shape_cast %80 : vector<2x8x8xf32> to vector<16x8xf32>
    %82 = vector.extract_strided_slice %79 {offsets = [2, 0, 0], sizes = [2, 8, 8], strides = [1, 1, 1]} : vector<8x8x8xf32> to vector<2x8x8xf32>
    %83 = vector.shape_cast %82 : vector<2x8x8xf32> to vector<16x8xf32>
    %84 = vector.extract_strided_slice %79 {offsets = [4, 0, 0], sizes = [2, 8, 8], strides = [1, 1, 1]} : vector<8x8x8xf32> to vector<2x8x8xf32>
    %85 = vector.shape_cast %84 : vector<2x8x8xf32> to vector<16x8xf32>
    %86 = vector.extract_strided_slice %79 {offsets = [6, 0, 0], sizes = [2, 8, 8], strides = [1, 1, 1]} : vector<8x8x8xf32> to vector<2x8x8xf32>
    %87 = vector.shape_cast %86 : vector<2x8x8xf32> to vector<16x8xf32>
    %88 = tpu.concatenate %81, %83, %85, %87 in 1 : vector<16x8xf32>, vector<16x8xf32>, vector<16x8xf32>, vector<16x8xf32> -> vector<16x32xf32>
    %89 = arith.truncf %88 : vector<16x32xf32> to vector<16x32xbf16>
    %c0_13 = arith.constant 0 : index
    %c0_14 = arith.constant 0 : index
    %c0_15 = arith.constant 0 : index
    %90 = vector.load %arg5[%c0_13, %c0_14, %c0_15] : memref<1x32x32xbf16, #tpu.memory_space<vmem>>, vector<1x32x32xbf16>
    %91 = vector.shape_cast %90 : vector<1x32x32xbf16> to vector<32x32xbf16>
    %cst_16 = arith.constant dense<0.000000e+00> : vector<16x32xf32>
    %92 = tpu.matmul %89, %91, %cst_16 {dimension_numbers = #tpu.dot_dimension_numbers<[1], [0], [0], [1], [0, 0, 1, 1], [], []>} : vector<16x32xbf16>, vector<32x32xbf16>, vector<16x32xf32> -> vector<16x32xf32>
    %c0_17 = arith.constant 0 : index
    %c0_18 = arith.constant 0 : index
    %c0_19 = arith.constant 0 : index
    %93 = vector.load %arg6[%c0_17, %c0_18, %c0_19] : memref<1x1x32xf32, #tpu.memory_space<vmem>>, vector<1x1x32xf32>
    %94 = vector.shape_cast %93 : vector<1x1x32xf32> to vector<1x32xf32>
    %95 = vector.broadcast %94 : vector<1x32xf32> to vector<16x32xf32>
    %96 = arith.addf %92, %95 : vector<16x32xf32>
    %97 = arith.addf %3, %96 : vector<16x32xf32>
    %c0_20 = arith.constant 0 : index
    %c0_21 = arith.constant 0 : index
    %c0_22 = arith.constant 0 : index
    %98 = vector.load %arg7[%c0_20, %c0_21, %c0_22] : memref<1x1x32xf32, #tpu.memory_space<vmem>>, vector<1x1x32xf32>
    %99 = vector.shape_cast %98 : vector<1x1x32xf32> to vector<1x32xf32>
    %c0_23 = arith.constant 0 : index
    %c0_24 = arith.constant 0 : index
    %c0_25 = arith.constant 0 : index
    %100 = vector.load %arg8[%c0_23, %c0_24, %c0_25] : memref<1x1x32xf32, #tpu.memory_space<vmem>>, vector<1x1x32xf32>
    %101 = vector.shape_cast %100 : vector<1x1x32xf32> to vector<1x32xf32>
    %cst_26 = arith.constant dense<0.000000e+00> : vector<16xf32>
    %102 = vector.multi_reduction <add>, %97, %cst_26 [1] : vector<16x32xf32> to vector<16xf32>
    %103 = vector.shape_cast %102 : vector<16xf32> to vector<16x1xf32>
    %cst_27 = arith.constant 3.200000e+01 : f32
    %104 = vector.broadcast %cst_27 : f32 to vector<16x1xf32>
    %105 = arith.divf %103, %104 : vector<16x1xf32>
    %106 = vector.broadcast %105 : vector<16x1xf32> to vector<16x32xf32>
    %107 = arith.subf %97, %106 : vector<16x32xf32>
    %108 = arith.mulf %107, %107 : vector<16x32xf32>
    %cst_28 = arith.constant dense<0.000000e+00> : vector<16xf32>
    %109 = vector.multi_reduction <add>, %108, %cst_28 [1] : vector<16x32xf32> to vector<16xf32>
    %110 = vector.shape_cast %109 : vector<16xf32> to vector<16x1xf32>
    %cst_29 = arith.constant 3.200000e+01 : f32
    %111 = vector.broadcast %cst_29 : f32 to vector<16x1xf32>
    %112 = arith.divf %110, %111 : vector<16x1xf32>
    %113 = vector.broadcast %105 : vector<16x1xf32> to vector<16x32xf32>
    %114 = arith.subf %97, %113 : vector<16x32xf32>
    %cst_30 = arith.constant 9.99999974E-6 : f32
    %115 = vector.broadcast %cst_30 : f32 to vector<16x1xf32>
    %116 = arith.addf %112, %115 : vector<16x1xf32>
    %117 = math.rsqrt %116 : vector<16x1xf32>
    %118 = vector.broadcast %117 : vector<16x1xf32> to vector<16x32xf32>
    %119 = arith.mulf %114, %118 : vector<16x32xf32>
    %120 = vector.broadcast %99 : vector<1x32xf32> to vector<16x32xf32>
    %121 = arith.mulf %119, %120 : vector<16x32xf32>
    %122 = vector.broadcast %101 : vector<1x32xf32> to vector<16x32xf32>
    %123 = arith.addf %121, %122 : vector<16x32xf32>
    %124 = arith.truncf %123 : vector<16x32xf32> to vector<16x32xbf16>
    %c0_31 = arith.constant 0 : index
    %c0_32 = arith.constant 0 : index
    %c0_33 = arith.constant 0 : index
    %125 = vector.load %arg11[%c0_31, %c0_32, %c0_33] : memref<1x32x128xbf16, #tpu.memory_space<vmem>>, vector<1x32x128xbf16>
    %126 = vector.shape_cast %125 : vector<1x32x128xbf16> to vector<32x128xbf16>
    %cst_34 = arith.constant dense<0.000000e+00> : vector<16x128xf32>
    %127 = tpu.matmul %124, %126, %cst_34 {dimension_numbers = #tpu.dot_dimension_numbers<[1], [0], [0], [1], [0, 0, 1, 1], [], []>} : vector<16x32xbf16>, vector<32x128xbf16>, vector<16x128xf32> -> vector<16x128xf32>
    %c0_35 = arith.constant 0 : index
    %c0_36 = arith.constant 0 : index
    %c0_37 = arith.constant 0 : index
    %128 = vector.load %arg12[%c0_35, %c0_36, %c0_37] : memref<1x1x128xf32, #tpu.memory_space<vmem>>, vector<1x1x128xf32>
    %129 = vector.shape_cast %128 : vector<1x1x128xf32> to vector<1x128xf32>
    %130 = vector.broadcast %129 : vector<1x128xf32> to vector<16x128xf32>
    %131 = arith.addf %127, %130 : vector<16x128xf32>
    %cst_38 = arith.constant 0.000000e+00 : f32
    %132 = vector.broadcast %cst_38 : f32 to vector<16x128xf32>
    %133 = arith.maximumf %131, %132 : vector<16x128xf32>
    %134 = arith.truncf %133 : vector<16x128xf32> to vector<16x128xbf16>
    %c0_39 = arith.constant 0 : index
    %c0_40 = arith.constant 0 : index
    %c0_41 = arith.constant 0 : index
    %135 = vector.load %arg13[%c0_39, %c0_40, %c0_41] : memref<1x128x32xbf16, #tpu.memory_space<vmem>>, vector<1x128x32xbf16>
    %136 = vector.shape_cast %135 : vector<1x128x32xbf16> to vector<128x32xbf16>
    %cst_42 = arith.constant dense<0.000000e+00> : vector<16x32xf32>
    %137 = tpu.matmul %134, %136, %cst_42 {dimension_numbers = #tpu.dot_dimension_numbers<[1], [0], [0], [1], [0, 0, 1, 1], [], []>} : vector<16x128xbf16>, vector<128x32xbf16>, vector<16x32xf32> -> vector<16x32xf32>
    %c0_43 = arith.constant 0 : index
    %c0_44 = arith.constant 0 : index
    %c0_45 = arith.constant 0 : index
    %138 = vector.load %arg14[%c0_43, %c0_44, %c0_45] : memref<1x1x32xf32, #tpu.memory_space<vmem>>, vector<1x1x32xf32>
    %139 = vector.shape_cast %138 : vector<1x1x32xf32> to vector<1x32xf32>
    %140 = vector.broadcast %139 : vector<1x32xf32> to vector<16x32xf32>
    %141 = arith.addf %137, %140 : vector<16x32xf32>
    %142 = arith.addf %123, %141 : vector<16x32xf32>
    %c0_46 = arith.constant 0 : index
    %c0_47 = arith.constant 0 : index
    %c0_48 = arith.constant 0 : index
    %143 = vector.load %arg9[%c0_46, %c0_47, %c0_48] : memref<1x1x32xf32, #tpu.memory_space<vmem>>, vector<1x1x32xf32>
    %144 = vector.shape_cast %143 : vector<1x1x32xf32> to vector<1x32xf32>
    %c0_49 = arith.constant 0 : index
    %c0_50 = arith.constant 0 : index
    %c0_51 = arith.constant 0 : index
    %145 = vector.load %arg10[%c0_49, %c0_50, %c0_51] : memref<1x1x32xf32, #tpu.memory_space<vmem>>, vector<1x1x32xf32>
    %146 = vector.shape_cast %145 : vector<1x1x32xf32> to vector<1x32xf32>
    %cst_52 = arith.constant dense<0.000000e+00> : vector<16xf32>
    %147 = vector.multi_reduction <add>, %142, %cst_52 [1] : vector<16x32xf32> to vector<16xf32>
    %148 = vector.shape_cast %147 : vector<16xf32> to vector<16x1xf32>
    %cst_53 = arith.constant 3.200000e+01 : f32
    %149 = vector.broadcast %cst_53 : f32 to vector<16x1xf32>
    %150 = arith.divf %148, %149 : vector<16x1xf32>
    %151 = vector.broadcast %150 : vector<16x1xf32> to vector<16x32xf32>
    %152 = arith.subf %142, %151 : vector<16x32xf32>
    %153 = arith.mulf %152, %152 : vector<16x32xf32>
    %cst_54 = arith.constant dense<0.000000e+00> : vector<16xf32>
    %154 = vector.multi_reduction <add>, %153, %cst_54 [1] : vector<16x32xf32> to vector<16xf32>
    %155 = vector.shape_cast %154 : vector<16xf32> to vector<16x1xf32>
    %cst_55 = arith.constant 3.200000e+01 : f32
    %156 = vector.broadcast %cst_55 : f32 to vector<16x1xf32>
    %157 = arith.divf %155, %156 : vector<16x1xf32>
    %158 = vector.broadcast %150 : vector<16x1xf32> to vector<16x32xf32>
    %159 = arith.subf %142, %158 : vector<16x32xf32>
    %cst_56 = arith.constant 9.99999974E-6 : f32
    %160 = vector.broadcast %cst_56 : f32 to vector<16x1xf32>
    %161 = arith.addf %157, %160 : vector<16x1xf32>
    %162 = math.rsqrt %161 : vector<16x1xf32>
    %163 = vector.broadcast %162 : vector<16x1xf32> to vector<16x32xf32>
    %164 = arith.mulf %159, %163 : vector<16x32xf32>
    %165 = vector.broadcast %144 : vector<1x32xf32> to vector<16x32xf32>
    %166 = arith.mulf %164, %165 : vector<16x32xf32>
    %167 = vector.broadcast %146 : vector<1x32xf32> to vector<16x32xf32>
    %168 = arith.addf %166, %167 : vector<16x32xf32>
    %c0_57 = arith.constant 0 : index
    %c0_58 = arith.constant 0 : index
    %169 = vector.load %arg18[%c0_57, %c0_58] : memref<16x32xf32, #tpu.memory_space<vmem>>, vector<16x32xf32>
    tpu.vector_store %arg18[%c0_57, %c0_58], %168 {strides = array<i32>} : memref<16x32xf32, #tpu.memory_space<vmem>>, vector<16x32xf32>,
    %c1_i32 = arith.constant 1 : i32
    %170 = arith.cmpi eq, %arg0, %c1_i32 : i32
    %171 = arith.extui %170 : i1 to i32
    %c0_i32_59 = arith.constant 0 : i32
    %172 = arith.cmpi ne, %171, %c0_i32_59 : i32
    scf.if %172 {
      %173 = arith.truncf %168 : vector<16x32xf32> to vector<16x32xbf16>
      %c0_60 = arith.constant 0 : index
      %c0_61 = arith.constant 0 : index
      %174 = vector.load %arg15[%c0_60, %c0_61] : memref<32x128xbf16, #tpu.memory_space<vmem>>, vector<32x128xbf16>
      %cst_62 = arith.constant dense<0.000000e+00> : vector<16x128xf32>
      %175 = tpu.matmul %173, %174, %cst_62 {dimension_numbers = #tpu.dot_dimension_numbers<[1], [0], [0], [1], [0, 0, 1, 1], [], []>} : vector<16x32xbf16>, vector<32x128xbf16>, vector<16x128xf32> -> vector<16x128xf32>
      %c0_63 = arith.constant 0 : index
      %c0_64 = arith.constant 0 : index
      %176 = vector.load %arg16[%c0_63, %c0_64] : memref<1x128xf32, #tpu.memory_space<vmem>>, vector<1x128xf32>
      %177 = vector.broadcast %176 : vector<1x128xf32> to vector<16x128xf32>
      %178 = arith.addf %175, %177 : vector<16x128xf32>
      %c0_65 = arith.constant 0 : index
      %c0_66 = arith.constant 0 : index
      %179 = vector.load %arg17[%c0_65, %c0_66] : memref<16x128xf32, #tpu.memory_space<vmem>>, vector<16x128xf32>
      tpu.vector_store %arg17[%c0_65, %c0_66], %178 {strides = array<i32>} : memref<16x128xf32, #tpu.memory_space<vmem>>, vector<16x128xf32>,
    } else {
    }
    return
  }
  func.func @transform_0(%arg0: i32) -> (i32, i32, i32) {
    %c0_i32 = arith.constant 0 : i32
    %c0_i32_0 = arith.constant 0 : i32
    %c0_i32_1 = arith.constant 0 : i32
    %c0_i32_2 = arith.constant 0 : i32
    return %c0_i32, %c0_i32_0, %c0_i32_1 : i32, i32, i32
  }
  func.func @transform_1(%arg0: i32) -> (i32, i32) {
    %c0_i32 = arith.constant 0 : i32
    %c0_i32_0 = arith.constant 0 : i32
    %c0_i32_1 = arith.constant 0 : i32
    return %c0_i32, %c0_i32_0 : i32, i32
  }
  func.func @transform_2(%arg0: i32) -> (i32, i32, i32) {
    %c0_i32 = arith.constant 0 : i32
    %c0_i32_0 = arith.constant 0 : i32
    %c0_i32_1 = arith.constant 0 : i32
    return %arg0, %c0_i32, %c0_i32_0 : i32, i32, i32
  }
  func.func @transform_3(%arg0: i32) -> (i32, i32, i32) {
    %c0_i32 = arith.constant 0 : i32
    %c0_i32_0 = arith.constant 0 : i32
    %c0_i32_1 = arith.constant 0 : i32
    return %arg0, %c0_i32, %c0_i32_0 : i32, i32, i32
  }
  func.func @transform_4(%arg0: i32) -> (i32, i32, i32) {
    %c0_i32 = arith.constant 0 : i32
    %c0_i32_0 = arith.constant 0 : i32
    %c0_i32_1 = arith.constant 0 : i32
    return %arg0, %c0_i32, %c0_i32_0 : i32, i32, i32
  }
  func.func @transform_5(%arg0: i32) -> (i32, i32, i32) {
    %c0_i32 = arith.constant 0 : i32
    %c0_i32_0 = arith.constant 0 : i32
    %c0_i32_1 = arith.constant 0 : i32
    return %arg0, %c0_i32, %c0_i32_0 : i32, i32, i32
  }
  func.func @transform_6(%arg0: i32) -> (i32, i32, i32) {
    %c0_i32 = arith.constant 0 : i32
    %c0_i32_0 = arith.constant 0 : i32
    %c0_i32_1 = arith.constant 0 : i32
    return %arg0, %c0_i32, %c0_i32_0 : i32, i32, i32
  }
  func.func @transform_7(%arg0: i32) -> (i32, i32, i32) {
    %c0_i32 = arith.constant 0 : i32
    %c0_i32_0 = arith.constant 0 : i32
    %c0_i32_1 = arith.constant 0 : i32
    return %arg0, %c0_i32, %c0_i32_0 : i32, i32, i32
  }
  func.func @transform_8(%arg0: i32) -> (i32, i32, i32) {
    %c0_i32 = arith.constant 0 : i32
    %c0_i32_0 = arith.constant 0 : i32
    %c0_i32_1 = arith.constant 0 : i32
    return %arg0, %c0_i32, %c0_i32_0 : i32, i32, i32
  }
  func.func @transform_9(%arg0: i32) -> (i32, i32, i32) {
    %c0_i32 = arith.constant 0 : i32
    %c0_i32_0 = arith.constant 0 : i32
    %c0_i32_1 = arith.constant 0 : i32
    return %arg0, %c0_i32, %c0_i32_0 : i32, i32, i32
  }
  func.func @transform_10(%arg0: i32) -> (i32, i32, i32) {
    %c0_i32 = arith.constant 0 : i32
    %c0_i32_0 = arith.constant 0 : i32
    %c0_i32_1 = arith.constant 0 : i32
    return %arg0, %c0_i32, %c0_i32_0 : i32, i32, i32
  }
  func.func @transform_11(%arg0: i32) -> (i32, i32, i32) {
    %c0_i32 = arith.constant 0 : i32
    %c0_i32_0 = arith.constant 0 : i32
    %c0_i32_1 = arith.constant 0 : i32
    return %arg0, %c0_i32, %c0_i32_0 : i32, i32, i32
  }
  func.func @transform_12(%arg0: i32) -> (i32, i32, i32) {
    %c0_i32 = arith.constant 0 : i32
    %c0_i32_0 = arith.constant 0 : i32
    %c0_i32_1 = arith.constant 0 : i32
    return %arg0, %c0_i32, %c0_i32_0 : i32, i32, i32
  }
  func.func @transform_13(%arg0: i32) -> (i32, i32, i32) {
    %c0_i32 = arith.constant 0 : i32
    %c0_i32_0 = arith.constant 0 : i32
    %c0_i32_1 = arith.constant 0 : i32
    return %arg0, %c0_i32, %c0_i32_0 : i32, i32, i32
  }
  func.func @transform_14(%arg0: i32) -> (i32, i32) {
    %c0_i32 = arith.constant 0 : i32
    %c0_i32_0 = arith.constant 0 : i32
    %c0_i32_1 = arith.constant 0 : i32
    return %c0_i32, %c0_i32_0 : i32, i32
  }
  func.func @transform_15(%arg0: i32) -> (i32, i32) {
    %c0_i32 = arith.constant 0 : i32
    %c0_i32_0 = arith.constant 0 : i32
    %c0_i32_1 = arith.constant 0 : i32
    return %c0_i32, %c0_i32_0 : i32, i32
  }
  func.func @transform_16(%arg0: i32) -> (i32, i32) {
    %c0_i32 = arith.constant 0 : i32
    %c0_i32_0 = arith.constant 0 : i32
    %c0_i32_1 = arith.constant 0 : i32
    return %c0_i32, %c0_i32_0 : i32, i32
  }
}

</mosaic_0001>

<llo_original>
// kernel: transformer_forward.1
$region0: #{transformer_forward.1}
  #allocation0 [shape = 'u32[]', space=smem, size = 0x4, offset = 0x4, fixed_abs, tag = 'smem constant byte address 0x4 - core index']
  #allocation1 [shape = 'u32[144,128]{1,0:T(1,128)}', space=vmem, size = 0x12000, scoped, tag = 'internal scratch']
  #allocation2 [shape = 'f32[16,32]{1,0:T(8,128)}', space=vmem, size = 0x2000, scoped, tag = 'scratch operand']
  %s0 = inlined_call_operand.vmem [shape: f32[2,8,32], index: 0, kind: input, shape index: {}]
  %s1 = inlined_call_operand.vmem [shape: f32[8,32], index: 1, kind: input, shape index: {}]
  %s2 = inlined_call_operand.vmem [shape: bf16[2,32,96], index: 2, kind: input, shape index: {}]
  %s3 = inlined_call_operand.vmem [shape: f32[2,1,96], index: 3, kind: input, shape index: {}]
  %s4 = inlined_call_operand.vmem [shape: bf16[2,32,32], index: 4, kind: input, shape index: {}]
  %s5 = inlined_call_operand.vmem [shape: f32[2,1,32], index: 5, kind: input, shape index: {}]
  %s6 = inlined_call_operand.vmem [shape: f32[2,1,32], index: 6, kind: input, shape index: {}]
  %s7 = inlined_call_operand.vmem [shape: f32[2,1,32], index: 7, kind: input, shape index: {}]
  %s8 = inlined_call_operand.vmem [shape: f32[2,1,32], index: 8, kind: input, shape index: {}]
  %s9 = inlined_call_operand.vmem [shape: f32[2,1,32], index: 9, kind: input, shape index: {}]
  %s10 = inlined_call_operand.vmem [shape: bf16[2,32,128], index: 10, kind: input, shape index: {}]
  %s11 = inlined_call_operand.vmem [shape: f32[2,1,128], index: 11, kind: input, shape index: {}]
  %s12 = inlined_call_operand.vmem [shape: bf16[2,128,32], index: 12, kind: input, shape index: {}]
  %s13 = inlined_call_operand.vmem [shape: f32[2,1,32], index: 13, kind: input, shape index: {}]
  %s14 = inlined_call_operand.vmem [shape: bf16[32,128], index: 14, kind: input, shape index: {}]
  %s15 = inlined_call_operand.vmem [shape: f32[1,128], index: 15, kind: input, shape index: {}]
  %s16 = inlined_call_operand.vmem [shape: f32[16,128], index: 16, kind: output, shape index: {}]
  %s17 = sld [smem:[#allocation0]]
  $region105: #{transformer_forward.1} parent=0
    _
  %s19 = ssub.s32 1, %s17
  %s20 = scalar_select 0, %s19, %s17
  loop: start=0, step=1, limit=4
  $region2: #{transformer_forward.1} parent=0 // loop_pre_header
    _
  $region3: #{transformer_forward.1} parent=0 // loop_header
    %s22 = sphi 0, %s26
    %p23 = scmp.ge.s32.totalorder %s22, 4
    %s30 = sphi 0, %s30
    %s32 = sphi 0, %s30
    %s33 = sphi 0, %s32
    %s47 = sphi 0, %s33
    %s51 = sphi 0, %s51
    %s53 = sphi 0, %s51
    %s54 = sphi 0, %s53
    %s68 = sphi 0, %s54
    %s74 = sphi 0, %s76
    %s77 = sphi 0, %s74
    %s78 = sphi 0, %s77
    %s94 = sphi 0, %s78
    %s100 = sphi 0, %s102
    %s103 = sphi 0, %s100
    %s104 = sphi 0, %s103
    %s120 = sphi 0, %s104
    %s126 = sphi 0, %s128
    %s129 = sphi 0, %s126
    %s130 = sphi 0, %s129
    %s146 = sphi 0, %s130
    %s152 = sphi 0, %s154
    %s155 = sphi 0, %s152
    %s156 = sphi 0, %s155
    %s172 = sphi 0, %s156
    %s178 = sphi 0, %s180
    %s181 = sphi 0, %s178
    %s182 = sphi 0, %s181
    %s198 = sphi 0, %s182
    %s204 = sphi 0, %s206
    %s207 = sphi 0, %s204
    %s208 = sphi 0, %s207
    %s224 = sphi 0, %s208
    %s230 = sphi 0, %s232
    %s233 = sphi 0, %s230
    %s234 = sphi 0, %s233
    %s250 = sphi 0, %s234
    %s256 = sphi 0, %s258
    %s259 = sphi 0, %s256
    %s260 = sphi 0, %s259
    %s276 = sphi 0, %s260
    %s282 = sphi 0, %s284
    %s285 = sphi 0, %s282
    %s286 = sphi 0, %s285
    %s302 = sphi 0, %s286
    %s308 = sphi 0, %s310
    %s311 = sphi 0, %s308
    %s312 = sphi 0, %s311
    %s328 = sphi 0, %s312
    %s334 = sphi 0, %s336
    %s337 = sphi 0, %s334
    %s338 = sphi 0, %s337
    %s354 = sphi 0, %s338
    %s360 = sphi 0, %s362
    %s363 = sphi 0, %s360
    %s364 = sphi 0, %s363
    %s380 = sphi 0, %s364
    %s384 = sphi 0, %s384
    %s386 = sphi 0, %s384
    %s387 = sphi 0, %s386
    %s401 = sphi 0, %s387
    %s405 = sphi 0, %s405
    %s407 = sphi 0, %s405
    %s408 = sphi 0, %s407
    %s422 = sphi 0, %s408
    %s426 = sphi 0, %s426
    %s428 = sphi 0, %s426
    %s429 = sphi 0, %s428
    %s443 = sphi 0, %s429
  $region4: #{transformer_forward.1} parent=0 // loop_header_branch
    %25 = sbr.rel (%p23) target = $region8
  $region5: #{transformer_forward.1} parent=0 // loop_body
    %s27 = ssub.s32 %s22, 1
    %s28 = ssub.s32 %s22, 2
    %s29 = sadd.s32 %s22, 1
    %s31 = sadd.s32 %s30, 1
    %p34 = scmp.eq.s32.totalorder %s22, 1
    %p35 = scmp.ne.s32.totalorder %s30, %s32
    %p36 = scmp.eq.s32.totalorder %s22, 0
    %p37 = por %p35, %p36
    %p38 = scmp.ne.s32.totalorder %s30, %s32
    %p39 = scmp.eq.s32.totalorder %s27, 1
    %p40 = por %p38, %p39
    %p41 = scmp.ne.s32.totalorder %s32, %s33
    %p42 = scmp.eq.s32.totalorder %s27, 0
    %p43 = por %p41, %p42
    %p44 = scmp.ne.s32.totalorder %s32, %s33
    %p45 = scmp.eq.s32.totalorder %s28, 1
    %p46 = por %p44, %p45
    %p48 = scmp.ne.s32.totalorder %s33, %s47
    %p49 = scmp.eq.s32.totalorder %s28, 0
    %p50 = por %p48, %p49
    %s52 = sadd.s32 %s51, 1
    %p55 = scmp.eq.s32.totalorder %s22, 1
    %p56 = scmp.ne.s32.totalorder %s51, %s53
    %p57 = scmp.eq.s32.totalorder %s22, 0
    %p58 = por %p56, %p57
    %p59 = scmp.ne.s32.totalorder %s51, %s53
    %p60 = scmp.eq.s32.totalorder %s27, 1
    %p61 = por %p59, %p60
    %p62 = scmp.ne.s32.totalorder %s53, %s54
    %p63 = scmp.eq.s32.totalorder %s27, 0
    %p64 = por %p62, %p63
    %p65 = scmp.ne.s32.totalorder %s53, %s54
    %p66 = scmp.eq.s32.totalorder %s28, 1
    %p67 = por %p65, %p66
    %p69 = scmp.ne.s32.totalorder %s54, %s68
    %p70 = scmp.eq.s32.totalorder %s28, 0
    %p71 = por %p69, %p70
    %s72 = ssub.s32 %s22, %s29
    %p73 = scmp.eq.s32.totalorder %s72, 0
    %s75 = sadd.s32 %s74, 1
    %s76 = scalar_select %p73, %s74, %s75
    %p79 = pneg %p73
    %p80 = scmp.eq.s32.totalorder %s22, 1
    %p81 = por %p79, %p80
    %p82 = scmp.ne.s32.totalorder %s74, %s77
    %p83 = scmp.eq.s32.totalorder %s22, 0
    %p84 = por %p82, %p83
    %p85 = scmp.ne.s32.totalorder %s74, %s77
    %p86 = scmp.eq.s32.totalorder %s27, 1
    %p87 = por %p85, %p86
    %p88 = scmp.ne.s32.totalorder %s77, %s78
    %p89 = scmp.eq.s32.totalorder %s27, 0
    %p90 = por %p88, %p89
    %p91 = scmp.ne.s32.totalorder %s77, %s78
    %p92 = scmp.eq.s32.totalorder %s28, 1
    %p93 = por %p91, %p92
    %p95 = scmp.ne.s32.totalorder %s78, %s94
    %p96 = scmp.eq.s32.totalorder %s28, 0
    %p97 = por %p95, %p96
    %s98 = ssub.s32 %s22, %s29
    %p99 = scmp.eq.s32.totalorder %s98, 0
    %s101 = sadd.s32 %s100, 1
    %s102 = scalar_select %p99, %s100, %s101
    %p105 = pneg %p99
    %p106 = scmp.eq.s32.totalorder %s22, 1
    %p107 = por %p105, %p106
    %p108 = scmp.ne.s32.totalorder %s100, %s103
    %p109 = scmp.eq.s32.totalorder %s22, 0
    %p110 = por %p108, %p109
    %p111 = scmp.ne.s32.totalorder %s100, %s103
    %p112 = scmp.eq.s32.totalorder %s27, 1
    %p113 = por %p111, %p112
    %p114 = scmp.ne.s32.totalorder %s103, %s104
    %p115 = scmp.eq.s32.totalorder %s27, 0
    %p116 = por %p114, %p115
    %p117 = scmp.ne.s32.totalorder %s103, %s104
    %p118 = scmp.eq.s32.totalorder %s28, 1
    %p119 = por %p117, %p118
    %p121 = scmp.ne.s32.totalorder %s104, %s120
    %p122 = scmp.eq.s32.totalorder %s28, 0
    %p123 = por %p121, %p122
    %s124 = ssub.s32 %s22, %s29
    %p125 = scmp.eq.s32.totalorder %s124, 0
    %s127 = sadd.s32 %s126, 1
    %s128 = scalar_select %p125, %s126, %s127
    %p131 = pneg %p125
    %p132 = scmp.eq.s32.totalorder %s22, 1
    %p133 = por %p131, %p132
    %p134 = scmp.ne.s32.totalorder %s126, %s129
    %p135 = scmp.eq.s32.totalorder %s22, 0
    %p136 = por %p134, %p135
    %p137 = scmp.ne.s32.totalorder %s126, %s129
    %p138 = scmp.eq.s32.totalorder %s27, 1
    %p139 = por %p137, %p138
    %p140 = scmp.ne.s32.totalorder %s129, %s130
    %p141 = scmp.eq.s32.totalorder %s27, 0
    %p142 = por %p140, %p141
    %p143 = scmp.ne.s32.totalorder %s129, %s130
    %p144 = scmp.eq.s32.totalorder %s28, 1
    %p145 = por %p143, %p144
    %p147 = scmp.ne.s32.totalorder %s130, %s146
    %p148 = scmp.eq.s32.totalorder %s28, 0
    %p149 = por %p147, %p148
    %s150 = ssub.s32 %s22, %s29
    %p151 = scmp.eq.s32.totalorder %s150, 0
    %s153 = sadd.s32 %s152, 1
    %s154 = scalar_select %p151, %s152, %s153
    %p157 = pneg %p151
    %p158 = scmp.eq.s32.totalorder %s22, 1
    %p159 = por %p157, %p158
    %p160 = scmp.ne.s32.totalorder %s152, %s155
    %p161 = scmp.eq.s32.totalorder %s22, 0
    %p162 = por %p160, %p161
    %p163 = scmp.ne.s32.totalorder %s152, %s155
    %p164 = scmp.eq.s32.totalorder %s27, 1
    %p165 = por %p163, %p164
    %p166 = scmp.ne.s32.totalorder %s155, %s156
    %p167 = scmp.eq.s32.totalorder %s27, 0
    %p168 = por %p166, %p167
    %p169 = scmp.ne.s32.totalorder %s155, %s156
    %p170 = scmp.eq.s32.totalorder %s28, 1
    %p171 = por %p169, %p170
    %p173 = scmp.ne.s32.totalorder %s156, %s172
    %p174 = scmp.eq.s32.totalorder %s28, 0
    %p175 = por %p173, %p174
    %s176 = ssub.s32 %s22, %s29
    %p177 = scmp.eq.s32.totalorder %s176, 0
    %s179 = sadd.s32 %s178, 1
    %s180 = scalar_select %p177, %s178, %s179
    %p183 = pneg %p177
    %p184 = scmp.eq.s32.totalorder %s22, 1
    %p185 = por %p183, %p184
    %p186 = scmp.ne.s32.totalorder %s178, %s181
    %p187 = scmp.eq.s32.totalorder %s22, 0
    %p188 = por %p186, %p187
    %p189 = scmp.ne.s32.totalorder %s178, %s181
    %p190 = scmp.eq.s32.totalorder %s27, 1
    %p191 = por %p189, %p190
    %p192 = scmp.ne.s32.totalorder %s181, %s182
    %p193 = scmp.eq.s32.totalorder %s27, 0
    %p194 = por %p192, %p193
    %p195 = scmp.ne.s32.totalorder %s181, %s182
    %p196 = scmp.eq.s32.totalorder %s28, 1
    %p197 = por %p195, %p196
    %p199 = scmp.ne.s32.totalorder %s182, %s198
    %p200 = scmp.eq.s32.totalorder %s28, 0
    %p201 = por %p199, %p200
    %s202 = ssub.s32 %s22, %s29
    %p203 = scmp.eq.s32.totalorder %s202, 0
    %s205 = sadd.s32 %s204, 1
    %s206 = scalar_select %p203, %s204, %s205
    %p209 = pneg %p203
    %p210 = scmp.eq.s32.totalorder %s22, 1
    %p211 = por %p209, %p210
    %p212 = scmp.ne.s32.totalorder %s204, %s207
    %p213 = scmp.eq.s32.totalorder %s22, 0
    %p214 = por %p212, %p213
    %p215 = scmp.ne.s32.totalorder %s204, %s207
    %p216 = scmp.eq.s32.totalorder %s27, 1
    %p217 = por %p215, %p216
    %p218 = scmp.ne.s32.totalorder %s207, %s208
    %p219 = scmp.eq.s32.totalorder %s27, 0
    %p220 = por %p218, %p219
    %p221 = scmp.ne.s32.totalorder %s207, %s208
    %p222 = scmp.eq.s32.totalorder %s28, 1
    %p223 = por %p221, %p222
    %p225 = scmp.ne.s32.totalorder %s208, %s224
    %p226 = scmp.eq.s32.totalorder %s28, 0
    %p227 = por %p225, %p226
    %s228 = ssub.s32 %s22, %s29
    %p229 = scmp.eq.s32.totalorder %s228, 0
    %s231 = sadd.s32 %s230, 1
    %s232 = scalar_select %p229, %s230, %s231
    %p235 = pneg %p229
    %p236 = scmp.eq.s32.totalorder %s22, 1
    %p237 = por %p235, %p236
    %p238 = scmp.ne.s32.totalorder %s230, %s233
    %p239 = scmp.eq.s32.totalorder %s22, 0
    %p240 = por %p238, %p239
    %p241 = scmp.ne.s32.totalorder %s230, %s233
    %p242 = scmp.eq.s32.totalorder %s27, 1
    %p243 = por %p241, %p242
    %p244 = scmp.ne.s32.totalorder %s233, %s234
    %p245 = scmp.eq.s32.totalorder %s27, 0
    %p246 = por %p244, %p245
    %p247 = scmp.ne.s32.totalorder %s233, %s234
    %p248 = scmp.eq.s32.totalorder %s28, 1
    %p249 = por %p247, %p248
    %p251 = scmp.ne.s32.totalorder %s234, %s250
    %p252 = scmp.eq.s32.totalorder %s28, 0
    %p253 = por %p251, %p252
    %s254 = ssub.s32 %s22, %s29
    %p255 = scmp.eq.s32.totalorder %s254, 0
    %s257 = sadd.s32 %s256, 1
    %s258 = scalar_select %p255, %s256, %s257
    %p261 = pneg %p255
    %p262 = scmp.eq.s32.totalorder %s22, 1
    %p263 = por %p261, %p262
    %p264 = scmp.ne.s32.totalorder %s256, %s259
    %p265 = scmp.eq.s32.totalorder %s22, 0
    %p266 = por %p264, %p265
    %p267 = scmp.ne.s32.totalorder %s256, %s259
    %p268 = scmp.eq.s32.totalorder %s27, 1
    %p269 = por %p267, %p268
    %p270 = scmp.ne.s32.totalorder %s259, %s260
    %p271 = scmp.eq.s32.totalorder %s27, 0
    %p272 = por %p270, %p271
    %p273 = scmp.ne.s32.totalorder %s259, %s260
    %p274 = scmp.eq.s32.totalorder %s28, 1
    %p275 = por %p273, %p274
    %p277 = scmp.ne.s32.totalorder %s260, %s276
    %p278 = scmp.eq.s32.totalorder %s28, 0
    %p279 = por %p277, %p278
    %s280 = ssub.s32 %s22, %s29
    %p281 = scmp.eq.s32.totalorder %s280, 0
    %s283 = sadd.s32 %s282, 1
    %s284 = scalar_select %p281, %s282, %s283
    %p287 = pneg %p281
    %p288 = scmp.eq.s32.totalorder %s22, 1
    %p289 = por %p287, %p288
    %p290 = scmp.ne.s32.totalorder %s282, %s285
    %p291 = scmp.eq.s32.totalorder %s22, 0
    %p292 = por %p290, %p291
    %p293 = scmp.ne.s32.totalorder %s282, %s285
    %p294 = scmp.eq.s32.totalorder %s27, 1
    %p295 = por %p293, %p294
    %p296 = scmp.ne.s32.totalorder %s285, %s286
    %p297 = scmp.eq.s32.totalorder %s27, 0
    %p298 = por %p296, %p297
    %p299 = scmp.ne.s32.totalorder %s285, %s286
    %p300 = scmp.eq.s32.totalorder %s28, 1
    %p301 = por %p299, %p300
    %p303 = scmp.ne.s32.totalorder %s286, %s302
    %p304 = scmp.eq.s32.totalorder %s28, 0
    %p305 = por %p303, %p304
    %s306 = ssub.s32 %s22, %s29
    %p307 = scmp.eq.s32.totalorder %s306, 0
    %s309 = sadd.s32 %s308, 1
    %s310 = scalar_select %p307, %s308, %s309
    %p313 = pneg %p307
    %p314 = scmp.eq.s32.totalorder %s22, 1
    %p315 = por %p313, %p314
    %p316 = scmp.ne.s32.totalorder %s308, %s311
    %p317 = scmp.eq.s32.totalorder %s22, 0
    %p318 = por %p316, %p317
    %p319 = scmp.ne.s32.totalorder %s308, %s311
    %p320 = scmp.eq.s32.totalorder %s27, 1
    %p321 = por %p319, %p320
    %p322 = scmp.ne.s32.totalorder %s311, %s312
    %p323 = scmp.eq.s32.totalorder %s27, 0
    %p324 = por %p322, %p323
    %p325 = scmp.ne.s32.totalorder %s311, %s312
    %p326 = scmp.eq.s32.totalorder %s28, 1
    %p327 = por %p325, %p326
    %p329 = scmp.ne.s32.totalorder %s312, %s328
    %p330 = scmp.eq.s32.totalorder %s28, 0
    %p331 = por %p329, %p330
    %s332 = ssub.s32 %s22, %s29
    %p333 = scmp.eq.s32.totalorder %s332, 0
    %s335 = sadd.s32 %s334, 1
    %s336 = scalar_select %p333, %s334, %s335
    %p339 = pneg %p333
    %p340 = scmp.eq.s32.totalorder %s22, 1
    %p341 = por %p339, %p340
    %p342 = scmp.ne.s32.totalorder %s334, %s337
    %p343 = scmp.eq.s32.totalorder %s22, 0
    %p344 = por %p342, %p343
    %p345 = scmp.ne.s32.totalorder %s334, %s337
    %p346 = scmp.eq.s32.totalorder %s27, 1
    %p347 = por %p345, %p346
    %p348 = scmp.ne.s32.totalorder %s337, %s338
    %p349 = scmp.eq.s32.totalorder %s27, 0
    %p350 = por %p348, %p349
    %p351 = scmp.ne.s32.totalorder %s337, %s338
    %p352 = scmp.eq.s32.totalorder %s28, 1
    %p353 = por %p351, %p352
    %p355 = scmp.ne.s32.totalorder %s338, %s354
    %p356 = scmp.eq.s32.totalorder %s28, 0
    %p357 = por %p355, %p356
    %s358 = ssub.s32 %s22, %s29
    %p359 = scmp.eq.s32.totalorder %s358, 0
    %s361 = sadd.s32 %s360, 1
    %s362 = scalar_select %p359, %s360, %s361
    %p365 = pneg %p359
    %p366 = scmp.eq.s32.totalorder %s22, 1
    %p367 = por %p365, %p366
    %p368 = scmp.ne.s32.totalorder %s360, %s363
    %p369 = scmp.eq.s32.totalorder %s22, 0
    %p370 = por %p368, %p369
    %p371 = scmp.ne.s32.totalorder %s360, %s363
    %p372 = scmp.eq.s32.totalorder %s27, 1
    %p373 = por %p371, %p372
    %p374 = scmp.ne.s32.totalorder %s363, %s364
    %p375 = scmp.eq.s32.totalorder %s27, 0
    %p376 = por %p374, %p375
    %p377 = scmp.ne.s32.totalorder %s363, %s364
    %p378 = scmp.eq.s32.totalorder %s28, 1
    %p379 = por %p377, %p378
    %p381 = scmp.ne.s32.totalorder %s364, %s380
    %p382 = scmp.eq.s32.totalorder %s28, 0
    %p383 = por %p381, %p382
    %s385 = sadd.s32 %s384, 1
    %p388 = scmp.eq.s32.totalorder %s22, 1
    %p389 = scmp.ne.s32.totalorder %s384, %s386
    %p390 = scmp.eq.s32.totalorder %s22, 0
    %p391 = por %p389, %p390
    %p392 = scmp.ne.s32.totalorder %s384, %s386
    %p393 = scmp.eq.s32.totalorder %s27, 1
    %p394 = por %p392, %p393
    %p395 = scmp.ne.s32.totalorder %s386, %s387
    %p396 = scmp.eq.s32.totalorder %s27, 0
    %p397 = por %p395, %p396
    %p398 = scmp.ne.s32.totalorder %s386, %s387
    %p399 = scmp.eq.s32.totalorder %s28, 1
    %p400 = por %p398, %p399
    %p402 = scmp.ne.s32.totalorder %s387, %s401
    %p403 = scmp.eq.s32.totalorder %s28, 0
    %p404 = por %p402, %p403
    %s406 = sadd.s32 %s405, 1
    %p409 = scmp.eq.s32.totalorder %s22, 1
    %p410 = scmp.ne.s32.totalorder %s405, %s407
    %p411 = scmp.eq.s32.totalorder %s22, 0
    %p412 = por %p410, %p411
    %p413 = scmp.ne.s32.totalorder %s405, %s407
    %p414 = scmp.eq.s32.totalorder %s27, 1
    %p415 = por %p413, %p414
    %p416 = scmp.ne.s32.totalorder %s407, %s408
    %p417 = scmp.eq.s32.totalorder %s27, 0
    %p418 = por %p416, %p417
    %p419 = scmp.ne.s32.totalorder %s407, %s408
    %p420 = scmp.eq.s32.totalorder %s28, 1
    %p421 = por %p419, %p420
    %p423 = scmp.ne.s32.totalorder %s408, %s422
    %p424 = scmp.eq.s32.totalorder %s28, 0
    %p425 = por %p423, %p424
    %s427 = sadd.s32 %s426, 1
    %p430 = scmp.eq.s32.totalorder %s22, 1
    %p431 = scmp.ne.s32.totalorder %s426, %s428
    %p432 = scmp.eq.s32.totalorder %s22, 0
    %p433 = por %p431, %p432
    %p434 = scmp.ne.s32.totalorder %s426, %s428
    %p435 = scmp.eq.s32.totalorder %s27, 1
    %p436 = por %p434, %p435
    %p437 = scmp.ne.s32.totalorder %s428, %s429
    %p438 = scmp.eq.s32.totalorder %s27, 0
    %p439 = por %p437, %p438
    %p440 = scmp.ne.s32.totalorder %s428, %s429
    %p441 = scmp.eq.s32.totalorder %s28, 1
    %p442 = por %p440, %p441
    %p444 = scmp.ne.s32.totalorder %s429, %s443
    %p445 = scmp.eq.s32.totalorder %s28, 0
    %p446 = por %p444, %p445
    %p447 = scmp.le.s32.totalorder 1, %s22
    %p448 = scmp.lt.s32.totalorder %s22, 3
    %p449 = pnand %p447, %p448
    %p450 = pneg %p449
    // Predicated region
    $region9: #{transformer_forward.1} parent=5 // pred_check
      _
    $region10: #{transformer_forward.1} parent=5 // pred_check_branch
      %452 = sbr.rel (%p449) target = $region12
    $region11: #{transformer_forward.1} parent=5 // pred_region
      %s453 = ssub.s32 %s22, 1
      // Predicated region
      $region13: #{transformer_forward.1} parent=11 // pred_check
        %p454 = pneg %p43
      $region14: #{transformer_forward.1} parent=11 // pred_check_branch
        %456 = sbr.rel (%p454) target = $region16
      $region15: #{transformer_forward.1} parent=11 // pred_region
        _
      $region16: #{transformer_forward.1} parent=11 // pred_fallthru
        _
      // Predicated region
      $region17: #{transformer_forward.1} parent=11 // pred_check
        %p457 = pneg %p64
      $region18: #{transformer_forward.1} parent=11 // pred_check_branch
        %459 = sbr.rel (%p457) target = $region20
      $region19: #{transformer_forward.1} parent=11 // pred_region
        _
      $region20: #{transformer_forward.1} parent=11 // pred_fallthru
        _
      // Predicated region
      $region21: #{transformer_forward.1} parent=11 // pred_check
        %p460 = pneg %p397
      $region22: #{transformer_forward.1} parent=11 // pred_check_branch
        %462 = sbr.rel (%p460) target = $region24
      $region23: #{transformer_forward.1} parent=11 // pred_region
        _
      $region24: #{transformer_forward.1} parent=11 // pred_fallthru
        _
      // Predicated region
      $region25: #{transformer_forward.1} parent=11 // pred_check
        %p463 = pneg %p418
      $region26: #{transformer_forward.1} parent=11 // pred_check_branch
        %465 = sbr.rel (%p463) target = $region28
      $region27: #{transformer_forward.1} parent=11 // pred_region
        _
      $region28: #{transformer_forward.1} parent=11 // pred_fallthru
        _
    $region12: #{transformer_forward.1} parent=5 // pred_fallthru
      _
    %p466 = scmp.lt.s32.totalorder %s22, 2
    // Predicated region
    $region29: #{transformer_forward.1} parent=5 // pred_check
      %p467 = pneg %p466
    $region30: #{transformer_forward.1} parent=5 // pred_check_branch
      %469 = sbr.rel (%p467) target = $region32
    $region31: #{transformer_forward.1} parent=5 // pred_region
      // Predicated region
      $region33: #{transformer_forward.1} parent=31 // pred_check
        %p470 = pneg %p84
      $region34: #{transformer_forward.1} parent=31 // pred_check_branch
        %472 = sbr.rel (%p470) target = $region36
      $region35: #{transformer_forward.1} parent=31 // pred_region
        %p473 = scmp.lt.s32.totalorder %s22, 1
        %s474 = scalar_select %p473, %s22, 1
        %s475 = smul.addr %s474, 4
        %s476 = smul.addr %s475, 4
        %s477 = scalar_lea.vmem %s2, %s476
      $region36: #{transformer_forward.1} parent=31 // pred_fallthru
        _
      // Predicated region
      $region37: #{transformer_forward.1} parent=31 // pred_check
        %p478 = pneg %p110
      $region38: #{transformer_forward.1} parent=31 // pred_check_branch
        %480 = sbr.rel (%p478) target = $region40
      $region39: #{transformer_forward.1} parent=31 // pred_region
        %p481 = scmp.lt.s32.totalorder %s22, 1
        %s482 = scalar_select %p481, %s22, 1
        %s483 = scalar_lea.vmem %s3, %s482
      $region40: #{transformer_forward.1} parent=31 // pred_fallthru
        _
      // Predicated region
      $region41: #{transformer_forward.1} parent=31 // pred_check
        %p484 = pneg %p136
      $region42: #{transformer_forward.1} parent=31 // pred_check_branch
        %486 = sbr.rel (%p484) target = $region44
      $region43: #{transformer_forward.1} parent=31 // pred_region
        %p487 = scmp.lt.s32.totalorder %s22, 1
        %s488 = scalar_select %p487, %s22, 1
        %s489 = smul.addr %s488, 4
        %s490 = smul.addr %s489, 4
        %s491 = scalar_lea.vmem %s4, %s490
      $region44: #{transformer_forward.1} parent=31 // pred_fallthru
        _
      // Predicated region
      $region45: #{transformer_forward.1} parent=31 // pred_check
        %p492 = pneg %p162
      $region46: #{transformer_forward.1} parent=31 // pred_check_branch
        %494 = sbr.rel (%p492) target = $region48
      $region47: #{transformer_forward.1} parent=31 // pred_region
        %p495 = scmp.lt.s32.totalorder %s22, 1
        %s496 = scalar_select %p495, %s22, 1
        %s497 = scalar_lea.vmem %s5, %s496
      $region48: #{transformer_forward.1} parent=31 // pred_fallthru
        _
      // Predicated region
      $region49: #{transformer_forward.1} parent=31 // pred_check
        %p498 = pneg %p188
      $region50: #{transformer_forward.1} parent=31 // pred_check_branch
        %500 = sbr.rel (%p498) target = $region52
      $region51: #{transformer_forward.1} parent=31 // pred_region
        %p501 = scmp.lt.s32.totalorder %s22, 1
        %s502 = scalar_select %p501, %s22, 1
        %s503 = scalar_lea.vmem %s6, %s502
      $region52: #{transformer_forward.1} parent=31 // pred_fallthru
        _
      // Predicated region
      $region53: #{transformer_forward.1} parent=31 // pred_check
        %p504 = pneg %p214
      $region54: #{transformer_forward.1} parent=31 // pred_check_branch
        %506 = sbr.rel (%p504) target = $region56
      $region55: #{transformer_forward.1} parent=31 // pred_region
        %p507 = scmp.lt.s32.totalorder %s22, 1
        %s508 = scalar_select %p507, %s22, 1
        %s509 = scalar_lea.vmem %s7, %s508
      $region56: #{transformer_forward.1} parent=31 // pred_fallthru
        _
      // Predicated region
      $region57: #{transformer_forward.1} parent=31 // pred_check
        %p510 = pneg %p240
      $region58: #{transformer_forward.1} parent=31 // pred_check_branch
        %512 = sbr.rel (%p510) target = $region60
      $region59: #{transformer_forward.1} parent=31 // pred_region
        %p513 = scmp.lt.s32.totalorder %s22, 1
        %s514 = scalar_select %p513, %s22, 1
        %s515 = scalar_lea.vmem %s8, %s514
      $region60: #{transformer_forward.1} parent=31 // pred_fallthru
        _
      // Predicated region
      $region61: #{transformer_forward.1} parent=31 // pred_check
        %p516 = pneg %p266
      $region62: #{transformer_forward.1} parent=31 // pred_check_branch
        %518 = sbr.rel (%p516) target = $region64
      $region63: #{transformer_forward.1} parent=31 // pred_region
        %p519 = scmp.lt.s32.totalorder %s22, 1
        %s520 = scalar_select %p519, %s22, 1
        %s521 = scalar_lea.vmem %s9, %s520
      $region64: #{transformer_forward.1} parent=31 // pred_fallthru
        _
      // Predicated region
      $region65: #{transformer_forward.1} parent=31 // pred_check
        %p522 = pneg %p292
      $region66: #{transformer_forward.1} parent=31 // pred_check_branch
        %524 = sbr.rel (%p522) target = $region68
      $region67: #{transformer_forward.1} parent=31 // pred_region
        %p525 = scmp.lt.s32.totalorder %s22, 1
        %s526 = scalar_select %p525, %s22, 1
        %s527 = smul.addr %s526, 4
        %s528 = smul.addr %s527, 4
        %s529 = scalar_lea.vmem %s10, %s528
      $region68: #{transformer_forward.1} parent=31 // pred_fallthru
        _
      // Predicated region
      $region69: #{transformer_forward.1} parent=31 // pred_check
        %p530 = pneg %p318
      $region70: #{transformer_forward.1} parent=31 // pred_check_branch
        %532 = sbr.rel (%p530) target = $region72
      $region71: #{transformer_forward.1} parent=31 // pred_region
        %p533 = scmp.lt.s32.totalorder %s22, 1
        %s534 = scalar_select %p533, %s22, 1
        %s535 = scalar_lea.vmem %s11, %s534
      $region72: #{transformer_forward.1} parent=31 // pred_fallthru
        _
      // Predicated region
      $region73: #{transformer_forward.1} parent=31 // pred_check
        %p536 = pneg %p344
      $region74: #{transformer_forward.1} parent=31 // pred_check_branch
        %538 = sbr.rel (%p536) target = $region76
      $region75: #{transformer_forward.1} parent=31 // pred_region
        %p539 = scmp.lt.s32.totalorder %s22, 1
        %s540 = scalar_select %p539, %s22, 1
        %s541 = smul.addr %s540, 16
        %s542 = smul.addr %s541, 4
        %s543 = scalar_lea.vmem %s12, %s542
      $region76: #{transformer_forward.1} parent=31 // pred_fallthru
        _
      // Predicated region
      $region77: #{transformer_forward.1} parent=31 // pred_check
        %p544 = pneg %p370
      $region78: #{transformer_forward.1} parent=31 // pred_check_branch
        %546 = sbr.rel (%p544) target = $region80
      $region79: #{transformer_forward.1} parent=31 // pred_region
        %p547 = scmp.lt.s32.totalorder %s22, 1
        %s548 = scalar_select %p547, %s22, 1
        %s549 = scalar_lea.vmem %s13, %s548
      $region80: #{transformer_forward.1} parent=31 // pred_fallthru
        _
    $region32: #{transformer_forward.1} parent=5 // pred_fallthru
      _
    %p550 = scmp.le.s32.totalorder 1, %s22
    %p551 = scmp.lt.s32.totalorder %s22, 3
    %p552 = pnand %p550, %p551
    %p553 = pneg %p552
    // Predicated region
    $region81: #{transformer_forward.1} parent=5 // pred_check
      _
    $region82: #{transformer_forward.1} parent=5 // pred_check_branch
      %555 = sbr.rel (%p552) target = $region84
    $region83: #{transformer_forward.1} parent=5 // pred_region
      %s556 = ssub.s32 %s22, 1
      %p557 = pneg %p43
      %p558 = pneg %p40
      %p559 = pneg %p64
      %p560 = pneg %p61
      %p561 = scmp.lt.s32.totalorder %s27, 1
      %s562 = scalar_select %p561, %s27, 1
      %s563 = smul.addr %s562, 4
      %s564 = smul.addr %s563, 4
      %s565 = scalar_lea.vmem %s2, %s564
      %p566 = pneg %p90
      %p567 = pneg %p87
      %p568 = scmp.lt.s32.totalorder %s27, 1
      %s569 = scalar_select %p568, %s27, 1
      %s570 = scalar_lea.vmem %s3, %s569
      %p571 = pneg %p116
      %p572 = pneg %p113
      %p573 = scmp.lt.s32.totalorder %s27, 1
      %s574 = scalar_select %p573, %s27, 1
      %s575 = smul.addr %s574, 4
      %s576 = smul.addr %s575, 4
      %s577 = scalar_lea.vmem %s4, %s576
      %p578 = pneg %p142
      %p579 = pneg %p139
      %p580 = scmp.lt.s32.totalorder %s27, 1
      %s581 = scalar_select %p580, %s27, 1
      %s582 = scalar_lea.vmem %s5, %s581
      %p583 = pneg %p168
      %p584 = pneg %p165
      %p585 = scmp.lt.s32.totalorder %s27, 1
      %s586 = scalar_select %p585, %s27, 1
      %s587 = scalar_lea.vmem %s6, %s586
      %p588 = pneg %p194
      %p589 = pneg %p191
      %p590 = scmp.lt.s32.totalorder %s27, 1
      %s591 = scalar_select %p590, %s27, 1
      %s592 = scalar_lea.vmem %s7, %s591
      %p593 = pneg %p220
      %p594 = pneg %p217
      %p595 = scmp.lt.s32.totalorder %s27, 1
      %s596 = scalar_select %p595, %s27, 1
      %s597 = scalar_lea.vmem %s8, %s596
      %p598 = pneg %p246
      %p599 = pneg %p243
      %p600 = scmp.lt.s32.totalorder %s27, 1
      %s601 = scalar_select %p600, %s27, 1
      %s602 = scalar_lea.vmem %s9, %s601
      %p603 = pneg %p272
      %p604 = pneg %p269
      %p605 = scmp.lt.s32.totalorder %s27, 1
      %s606 = scalar_select %p605, %s27, 1
      %s607 = smul.addr %s606, 4
      %s608 = smul.addr %s607, 4
      %s609 = scalar_lea.vmem %s10, %s608
      %p610 = pneg %p298
      %p611 = pneg %p295
      %p612 = scmp.lt.s32.totalorder %s27, 1
      %s613 = scalar_select %p612, %s27, 1
      %s614 = scalar_lea.vmem %s11, %s613
      %p615 = pneg %p324
      %p616 = pneg %p321
      %p617 = scmp.lt.s32.totalorder %s27, 1
      %s618 = scalar_select %p617, %s27, 1
      %s619 = smul.addr %s618, 16
      %s620 = smul.addr %s619, 4
      %s621 = scalar_lea.vmem %s12, %s620
      %p622 = pneg %p350
      %p623 = pneg %p347
      %p624 = scmp.lt.s32.totalorder %s27, 1
      %s625 = scalar_select %p624, %s27, 1
      %s626 = scalar_lea.vmem %s13, %s625
      %p627 = pneg %p376
      %p628 = pneg %p373
      %p629 = pneg %p397
      %p630 = pneg %p394
      %p631 = pneg %p418
      %p632 = pneg %p415
      %p633 = pneg %p439
      %p634 = pneg %p436
      %p635 = scmp.lt.s32.totalorder %s27, 1
      %s636 = scalar_select %p635, %s27, 1
      %s637 = smul.addr %s636, 4
      %s638 = smul.addr %s637, 4
      %s639 = scalar_lea.vmem %s2, %s638
      %p640 = scmp.lt.s32.totalorder %s27, 1
      %s641 = scalar_select %p640, %s27, 1
      %s642 = scalar_lea.vmem %s3, %s641
      %p643 = scmp.lt.s32.totalorder %s27, 1
      %s644 = scalar_select %p643, %s27, 1
      %s645 = smul.addr %s644, 4
      %s646 = smul.addr %s645, 4
      %s647 = scalar_lea.vmem %s4, %s646
      %p648 = scmp.lt.s32.totalorder %s27, 1
      %s649 = scalar_select %p648, %s27, 1
      %s650 = scalar_lea.vmem %s5, %s649
      %p651 = scmp.lt.s32.totalorder %s27, 1
      %s652 = scalar_select %p651, %s27, 1
      %s653 = scalar_lea.vmem %s6, %s652
      %p654 = scmp.lt.s32.totalorder %s27, 1
      %s655 = scalar_select %p654, %s27, 1
      %s656 = scalar_lea.vmem %s7, %s655
      %p657 = scmp.lt.s32.totalorder %s27, 1
      %s658 = scalar_select %p657, %s27, 1
      %s659 = scalar_lea.vmem %s8, %s658
      %p660 = scmp.lt.s32.totalorder %s27, 1
      %s661 = scalar_select %p660, %s27, 1
      %s662 = scalar_lea.vmem %s9, %s661
      %p663 = scmp.lt.s32.totalorder %s27, 1
      %s664 = scalar_select %p663, %s27, 1
      %s665 = smul.addr %s664, 4
      %s666 = smul.addr %s665, 4
      %s667 = scalar_lea.vmem %s10, %s666
      %p668 = scmp.lt.s32.totalorder %s27, 1
      %s669 = scalar_select %p668, %s27, 1
      %s670 = scalar_lea.vmem %s11, %s669
      %p671 = scmp.lt.s32.totalorder %s27, 1
      %s672 = scalar_select %p671, %s27, 1
      %s673 = smul.addr %s672, 16
      %s674 = smul.addr %s673, 4
      %s675 = scalar_lea.vmem %s12, %s674
      %p676 = scmp.lt.s32.totalorder %s27, 1
      %s677 = scalar_select %p676, %s27, 1
      %s678 = scalar_lea.vmem %s13, %s677
      %p680 = scmp.eq.s32.totalorder %s27, 0
      // Predicated region
      $region85: #{transformer_forward.1} parent=83 // pred_check
        %p681 = pneg %p680
      $region86: #{transformer_forward.1} parent=83 // pred_check_branch
        %683 = sbr.rel (%p681) target = $region88
      $region87: #{transformer_forward.1} parent=83 // pred_region
        %v684 = vld [vmem:[%s0] sm:$0xff]
        %v685 = vld [vmem:[%s0 + $0x8] sm:$0xff]
        %v686 = vld [vmem:[%s1] sm:$0xff]
        %v687 = vadd.f32 %v684, %v686
        %v688 = vadd.f32 %v685, %v686
        %vm689 = vcmask 261120
        %690 = vst.msk [vmem:[#allocation2] sm:$0xff] %vm689, %v687
        %691 = vst.msk [vmem:[#allocation2 + $0x8] sm:$0xff] %vm689, %v688
      $region88: #{transformer_forward.1} parent=83 // pred_fallthru
        _
      %v692 = vld [vmem:[#allocation2] sm:$0xff]
      %v693 = vld [vmem:[#allocation2 + $0x8] sm:$0xff]
      %v694 = vpack.c.bf16 %v693, %v692
      %v695 = vld [vmem:[%s639] sm:$0xf]
      %v696 = vld [vmem:[%s639 + $0x4] sm:$0xf]
      %v697 = vld [vmem:[%s639 + $0x8] sm:$0xf]
      %v698 = vld [vmem:[%s639 + $0xc] sm:$0xf]
      %v699 = vld [vmem:[%s642] sm:$0x1]
      %v701 = vlaneseq
      %v702 = vshrl.u32 %v701, 7
      %v703 = vsub.s32 0, %v702
      %v704 = vrot.slane %v699, %v703
      %v710 = vunpack.c.l.b16 %v695
      %v711 = vunpack.c.l.b16 %v696
      %v712 = vunpack.c.l.b16 %v697
      %v713 = vunpack.c.l.b16 %v698
      %v714 = vpack.c.b16 %v711, %v710
      %v715 = vpack.c.b16 %v713, %v712
      %vm718 = vcmask 261120
      %v720 = vsel %vm718, %v694, 0
      %722 = vmatprep.subr.bf16.mxu0 0
      %723 = vmatpush1.bf16.msra.mxu0 %v714
      %724 = vmatprep.subr.bf16.mxu0 0
      %725 = vmatpush1.bf16.msra.mxu0 %v715
      %726 = vmatprep.subr.bf16.mxu0 0
      %727 = vmatpush1.bf16.msra.mxu0 0
      %728 = vmatprep.subr.bf16.mxu0 0
      %729 = vmatpush1.bf16.msra.mxu0 0
      %730 = vmatprep.subr.bf16.mxu0 0
      %731 = vmatpush1.bf16.msra.mxu0 0
      %732 = vmatprep.subr.bf16.mxu0 0
      %733 = vmatpush1.bf16.msra.mxu0 0
      %734 = vmatprep.subr.bf16.mxu0 0
      %735 = vmatpush1.bf16.msra.mxu0 0
      %736 = vmatprep.subr.bf16.mxu0 0
      %737 = vmatpush1.bf16.msra.mxu0 0
      %738 = vmatprep.subr.bf16.mxu0 0
      %739 = vmatpush1.bf16.msra.mxu0 0
      %740 = vmatprep.subr.bf16.mxu0 0
      %741 = vmatpush1.bf16.msra.mxu0 0
      %742 = vmatprep.subr.bf16.mxu0 0
      %743 = vmatpush1.bf16.msra.mxu0 0
      %744 = vmatprep.subr.bf16.mxu0 0
      %745 = vmatpush1.bf16.msra.mxu0 0
      %746 = vmatprep.subr.bf16.mxu0 0
      %747 = vmatpush1.bf16.msra.mxu0 0
      %748 = vmatprep.subr.bf16.mxu0 0
      %749 = vmatpush1.bf16.msra.mxu0 0
      %750 = vmatprep.subr.bf16.mxu0 0
      %751 = vmatpush1.bf16.msra.mxu0 0
      %752 = vmatprep.subr.bf16.mxu0 0
      %753 = vmatpush1.bf16.msra.mxu0 0
      %754 = vmatprep.mubr.bf16.mxu0 0
      %755 = vmatmul.mubr.bf16.gmra.mrb[0].mxu0 %v720
      %v756 = vpop.f32.mrb[0].mxu0
      %v757 = vadd.f32 %v704, %v756
      %v758 = vpop.f32.mrb[0].mxu0
      %v759 = vpop.f32.mrb[0].mxu0
      %v760 = vadd.f32 %v704, %v759
      %v761 = vpop.f32.mrb[0].mxu0
      %762 = vdwg.mxu0
      %765 = vrot.lane.b32.xlu0 %v757, 120
      %v766 = vpop.permute.xlu0 %765
      %767 = vrot.lane.b32.xlu0 %v760, 120
      %v768 = vpop.permute.xlu0 %767
      %771 = vrot.lane.b32.xlu0 %v757, 112
      %v772 = vpop.permute.xlu0 %771
      %773 = vrot.lane.b32.xlu0 %v760, 112
      %v774 = vpop.permute.xlu0 %773
      %777 = vrot.lane.b32.xlu0 %v757, 104
      %v778 = vpop.permute.xlu0 %777
      %779 = vrot.lane.b32.xlu0 %v760, 104
      %v780 = vpop.permute.xlu0 %779
      %v783 = vpack.c.bf16 %v757, %v757
      %v784 = vpack.c.bf16 %v760, %v760
      %v785 = vpack.c.bf16 %v766, %v766
      %v786 = vpack.c.bf16 %v768, %v768
      %v787 = vpack.c.bf16 %v772, %v772
      %v788 = vpack.c.bf16 %v774, %v774
      %v789 = vpack.c.bf16 %v778, %v778
      %v790 = vpack.c.bf16 %v780, %v780
      %792 = vrot.lane.b32.xlu0 %v783, 96
      %v793 = vpop.permute.xlu0 %792
      %vm794 = vcmask 64512
      %v796 = vsel %vm794, %v783, 0
      %v799 = vsel %vm794, %v793, 0
      %801 = vmatprep.subr.bf16.mxu0 0
      %802 = vmatpush1.bf16.xpose.msra.mxu0 %v799
      %803 = vmatprep.subr.bf16.mxu0 0
      %804 = vmatpush1.bf16.xpose.msra.mxu0 0
      %805 = vmatprep.subr.bf16.mxu0 0
      %806 = vmatpush1.bf16.xpose.msra.mxu0 0
      %807 = vmatprep.subr.bf16.mxu0 0
      %808 = vmatpush1.bf16.xpose.msra.mxu0 0
      %809 = vmatprep.subr.bf16.mxu0 0
      %810 = vmatpush1.bf16.xpose.msra.mxu0 0
      %811 = vmatprep.subr.bf16.mxu0 0
      %812 = vmatpush1.bf16.xpose.msra.mxu0 0
      %813 = vmatprep.subr.bf16.mxu0 0
      %814 = vmatpush1.bf16.xpose.msra.mxu0 0
      %815 = vmatprep.subr.bf16.mxu0 0
      %816 = vmatpush1.bf16.xpose.msra.mxu0 0
      %817 = vmatprep.subr.bf16.mxu0 0
      %818 = vmatpush1.bf16.xpose.msra.mxu0 0
      %819 = vmatprep.subr.bf16.mxu0 0
      %820 = vmatpush1.bf16.xpose.msra.mxu0 0
      %821 = vmatprep.subr.bf16.mxu0 0
      %822 = vmatpush1.bf16.xpose.msra.mxu0 0
      %823 = vmatprep.subr.bf16.mxu0 0
      %824 = vmatpush1.bf16.xpose.msra.mxu0 0
      %825 = vmatprep.subr.bf16.mxu0 0
      %826 = vmatpush1.bf16.xpose.msra.mxu0 0
      %827 = vmatprep.subr.bf16.mxu0 0
      %828 = vmatpush1.bf16.xpose.msra.mxu0 0
      %829 = vmatprep.subr.bf16.mxu0 0
      %830 = vmatpush1.bf16.xpose.msra.mxu0 0
      %831 = vmatprep.subr.bf16.mxu0 0
      %832 = vmatpush1.bf16.xpose.msra.mxu0 0
      %833 = vmatprep.mubr.bf16.mxu0 0
      %834 = vmatmul.mubr.bf16.gmra.mrb[0].mxu0 %v796
      %v835 = vpop.f32.mrb[0].mxu0
      %v836 = vadd.f32 0.0, %v835
      %v837 = vpop.f32.mrb[0].mxu0
      %v838 = vpop.f32.mrb[0].mxu0
      %v839 = vpop.f32.mrb[0].mxu0
      %840 = vdwg.mxu0
      %842 = vrot.lane.b32.xlu0 %v784, 96
      %v843 = vpop.permute.xlu0 %842
      %v845 = vsel %vm794, %v784, 0
      %v848 = vsel %vm794, %v843, 0
      %850 = vmatprep.subr.bf16.mxu0 0
      %851 = vmatpush1.bf16.xpose.msra.mxu0 %v848
      %852 = vmatprep.subr.bf16.mxu0 0
      %853 = vmatpush1.bf16.xpose.msra.mxu0 0
      %854 = vmatprep.subr.bf16.mxu0 0
      %855 = vmatpush1.bf16.xpose.msra.mxu0 0
      %856 = vmatprep.subr.bf16.mxu0 0
      %857 = vmatpush1.bf16.xpose.msra.mxu0 0
      %858 = vmatprep.subr.bf16.mxu0 0
      %859 = vmatpush1.bf16.xpose.msra.mxu0 0
      %860 = vmatprep.subr.bf16.mxu0 0
      %861 = vmatpush1.bf16.xpose.msra.mxu0 0
      %862 = vmatprep.subr.bf16.mxu0 0
      %863 = vmatpush1.bf16.xpose.msra.mxu0 0
      %864 = vmatprep.subr.bf16.mxu0 0
      %865 = vmatpush1.bf16.xpose.msra.mxu0 0
      %866 = vmatprep.subr.bf16.mxu0 0
      %867 = vmatpush1.bf16.xpose.msra.mxu0 0
      %868 = vmatprep.subr.bf16.mxu0 0
      %869 = vmatpush1.bf16.xpose.msra.mxu0 0
      %870 = vmatprep.subr.bf16.mxu0 0
      %871 = vmatpush1.bf16.xpose.msra.mxu0 0
      %872 = vmatprep.subr.bf16.mxu0 0
      %873 = vmatpush1.bf16.xpose.msra.mxu0 0
      %874 = vmatprep.subr.bf16.mxu0 0
      %875 = vmatpush1.bf16.xpose.msra.mxu0 0
      %876 = vmatprep.subr.bf16.mxu0 0
      %877 = vmatpush1.bf16.xpose.msra.mxu0 0
      %878 = vmatprep.subr.bf16.mxu0 0
      %879 = vmatpush1.bf16.xpose.msra.mxu0 0
      %880 = vmatprep.subr.bf16.mxu0 0
      %881 = vmatpush1.bf16.xpose.msra.mxu0 0
      %882 = vmatprep.mubr.bf16.mxu0 0
      %883 = vmatmul.mubr.bf16.gmra.mrb[0].mxu0 %v845
      %v884 = vpop.f32.mrb[0].mxu0
      %v885 = vadd.f32 0.0, %v884
      %v886 = vpop.f32.mrb[0].mxu0
      %v887 = vpop.f32.mrb[0].mxu0
      %v888 = vpop.f32.mrb[0].mxu0
      %889 = vdwg.mxu0
      %891 = vrot.lane.b32.xlu0 %v785, 96
      %v892 = vpop.permute.xlu0 %891
      %v894 = vsel %vm794, %v785, 0
      %v897 = vsel %vm794, %v892, 0
      %899 = vmatprep.subr.bf16.mxu0 0
      %900 = vmatpush1.bf16.xpose.msra.mxu0 %v897
      %901 = vmatprep.subr.bf16.mxu0 0
      %902 = vmatpush1.bf16.xpose.msra.mxu0 0
      %903 = vmatprep.subr.bf16.mxu0 0
      %904 = vmatpush1.bf16.xpose.msra.mxu0 0
      %905 = vmatprep.subr.bf16.mxu0 0
      %906 = vmatpush1.bf16.xpose.msra.mxu0 0
      %907 = vmatprep.subr.bf16.mxu0 0
      %908 = vmatpush1.bf16.xpose.msra.mxu0 0
      %909 = vmatprep.subr.bf16.mxu0 0
      %910 = vmatpush1.bf16.xpose.msra.mxu0 0
      %911 = vmatprep.subr.bf16.mxu0 0
      %912 = vmatpush1.bf16.xpose.msra.mxu0 0
      %913 = vmatprep.subr.bf16.mxu0 0
      %914 = vmatpush1.bf16.xpose.msra.mxu0 0
      %915 = vmatprep.subr.bf16.mxu0 0
      %916 = vmatpush1.bf16.xpose.msra.mxu0 0
      %917 = vmatprep.subr.bf16.mxu0 0
      %918 = vmatpush1.bf16.xpose.msra.mxu0 0
      %919 = vmatprep.subr.bf16.mxu0 0
      %920 = vmatpush1.bf16.xpose.msra.mxu0 0
      %921 = vmatprep.subr.bf16.mxu0 0
      %922 = vmatpush1.bf16.xpose.msra.mxu0 0
      %923 = vmatprep.subr.bf16.mxu0 0
      %924 = vmatpush1.bf16.xpose.msra.mxu0 0
      %925 = vmatprep.subr.bf16.mxu0 0
      %926 = vmatpush1.bf16.xpose.msra.mxu0 0
      %927 = vmatprep.subr.bf16.mxu0 0
      %928 = vmatpush1.bf16.xpose.msra.mxu0 0
      %929 = vmatprep.subr.bf16.mxu0 0
      %930 = vmatpush1.bf16.xpose.msra.mxu0 0
      %931 = vmatprep.mubr.bf16.mxu0 0
      %932 = vmatmul.mubr.bf16.gmra.mrb[0].mxu0 %v894
      %v933 = vpop.f32.mrb[0].mxu0
      %v934 = vadd.f32 0.0, %v933
      %v935 = vpop.f32.mrb[0].mxu0
      %v936 = vpop.f32.mrb[0].mxu0
      %v937 = vpop.f32.mrb[0].mxu0
      %938 = vdwg.mxu0
      %940 = vrot.lane.b32.xlu0 %v786, 96
      %v941 = vpop.permute.xlu0 %940
      %v943 = vsel %vm794, %v786, 0
      %v946 = vsel %vm794, %v941, 0
      %948 = vmatprep.subr.bf16.mxu0 0
      %949 = vmatpush1.bf16.xpose.msra.mxu0 %v946
      %950 = vmatprep.subr.bf16.mxu0 0
      %951 = vmatpush1.bf16.xpose.msra.mxu0 0
      %952 = vmatprep.subr.bf16.mxu0 0
      %953 = vmatpush1.bf16.xpose.msra.mxu0 0
      %954 = vmatprep.subr.bf16.mxu0 0
      %955 = vmatpush1.bf16.xpose.msra.mxu0 0
      %956 = vmatprep.subr.bf16.mxu0 0
      %957 = vmatpush1.bf16.xpose.msra.mxu0 0
      %958 = vmatprep.subr.bf16.mxu0 0
      %959 = vmatpush1.bf16.xpose.msra.mxu0 0
      %960 = vmatprep.subr.bf16.mxu0 0
      %961 = vmatpush1.bf16.xpose.msra.mxu0 0
      %962 = vmatprep.subr.bf16.mxu0 0
      %963 = vmatpush1.bf16.xpose.msra.mxu0 0
      %964 = vmatprep.subr.bf16.mxu0 0
      %965 = vmatpush1.bf16.xpose.msra.mxu0 0
      %966 = vmatprep.subr.bf16.mxu0 0
      %967 = vmatpush1.bf16.xpose.msra.mxu0 0
      %968 = vmatprep.subr.bf16.mxu0 0
      %969 = vmatpush1.bf16.xpose.msra.mxu0 0
      %970 = vmatprep.subr.bf16.mxu0 0
      %971 = vmatpush1.bf16.xpose.msra.mxu0 0
      %972 = vmatprep.subr.bf16.mxu0 0
      %973 = vmatpush1.bf16.xpose.msra.mxu0 0
      %974 = vmatprep.subr.bf16.mxu0 0
      %975 = vmatpush1.bf16.xpose.msra.mxu0 0
      %976 = vmatprep.subr.bf16.mxu0 0
      %977 = vmatpush1.bf16.xpose.msra.mxu0 0
      %978 = vmatprep.subr.bf16.mxu0 0
      %979 = vmatpush1.bf16.xpose.msra.mxu0 0
      %980 = vmatprep.mubr.bf16.mxu0 0
      %981 = vmatmul.mubr.bf16.gmra.mrb[0].mxu0 %v943
      %v982 = vpop.f32.mrb[0].mxu0
      %v983 = vadd.f32 0.0, %v982
      %v984 = vpop.f32.mrb[0].mxu0
      %v985 = vpop.f32.mrb[0].mxu0
      %v986 = vpop.f32.mrb[0].mxu0
      %987 = vdwg.mxu0
      %989 = vrot.lane.b32.xlu0 %v787, 96
      %v990 = vpop.permute.xlu0 %989
      %v992 = vsel %vm794, %v787, 0
      %v995 = vsel %vm794, %v990, 0
      %997 = vmatprep.subr.bf16.mxu0 0
      %998 = vmatpush1.bf16.xpose.msra.mxu0 %v995
      %999 = vmatprep.subr.bf16.mxu0 0
      %1000 = vmatpush1.bf16.xpose.msra.mxu0 0
      %1001 = vmatprep.subr.bf16.mxu0 0
      %1002 = vmatpush1.bf16.xpose.msra.mxu0 0
      %1003 = vmatprep.subr.bf16.mxu0 0
      %1004 = vmatpush1.bf16.xpose.msra.mxu0 0
      %1005 = vmatprep.subr.bf16.mxu0 0
      %1006 = vmatpush1.bf16.xpose.msra.mxu0 0
      %1007 = vmatprep.subr.bf16.mxu0 0
      %1008 = vmatpush1.bf16.xpose.msra.mxu0 0
      %1009 = vmatprep.subr.bf16.mxu0 0
      %1010 = vmatpush1.bf16.xpose.msra.mxu0 0
      %1011 = vmatprep.subr.bf16.mxu0 0
      %1012 = vmatpush1.bf16.xpose.msra.mxu0 0
      %1013 = vmatprep.subr.bf16.mxu0 0
      %1014 = vmatpush1.bf16.xpose.msra.mxu0 0
      %1015 = vmatprep.subr.bf16.mxu0 0
      %1016 = vmatpush1.bf16.xpose.msra.mxu0 0
      %1017 = vmatprep.subr.bf16.mxu0 0
      %1018 = vmatpush1.bf16.xpose.msra.mxu0 0
      %1019 = vmatprep.subr.bf16.mxu0 0
      %1020 = vmatpush1.bf16.xpose.msra.mxu0 0
      %1021 = vmatprep.subr.bf16.mxu0 0
      %1022 = vmatpush1.bf16.xpose.msra.mxu0 0
      %1023 = vmatprep.subr.bf16.mxu0 0
      %1024 = vmatpush1.bf16.xpose.msra.mxu0 0
      %1025 = vmatprep.subr.bf16.mxu0 0
      %1026 = vmatpush1.bf16.xpose.msra.mxu0 0
      %1027 = vmatprep.subr.bf16.mxu0 0
      %1028 = vmatpush1.bf16.xpose.msra.mxu0 0
      %1029 = vmatprep.mubr.bf16.mxu0 0
      %1030 = vmatmul.mubr.bf16.gmra.mrb[0].mxu0 %v992
      %v1031 = vpop.f32.mrb[0].mxu0
      %v1032 = vadd.f32 0.0, %v1031
      %v1033 = vpop.f32.mrb[0].mxu0
      %v1034 = vpop.f32.mrb[0].mxu0
      %v1035 = vpop.f32.mrb[0].mxu0
      %1036 = vdwg.mxu0
      %1038 = vrot.lane.b32.xlu0 %v788, 96
      %v1039 = vpop.permute.xlu0 %1038
      %v1041 = vsel %vm794, %v788, 0
      %v1044 = vsel %vm794, %v1039, 0
      %1046 = vmatprep.subr.bf16.mxu0 0
      %1047 = vmatpush1.bf16.xpose.msra.mxu0 %v1044
      %1048 = vmatprep.subr.bf16.mxu0 0
      %1049 = vmatpush1.bf16.xpose.msra.mxu0 0
      %1050 = vmatprep.subr.bf16.mxu0 0
      %1051 = vmatpush1.bf16.xpose.msra.mxu0 0
      %1052 = vmatprep.subr.bf16.mxu0 0
      %1053 = vmatpush1.bf16.xpose.msra.mxu0 0
      %1054 = vmatprep.subr.bf16.mxu0 0
      %1055 = vmatpush1.bf16.xpose.msra.mxu0 0
      %1056 = vmatprep.subr.bf16.mxu0 0
      %1057 = vmatpush1.bf16.xpose.msra.mxu0 0
      %1058 = vmatprep.subr.bf16.mxu0 0
      %1059 = vmatpush1.bf16.xpose.msra.mxu0 0
      %1060 = vmatprep.subr.bf16.mxu0 0
      %1061 = vmatpush1.bf16.xpose.msra.mxu0 0
      %1062 = vmatprep.subr.bf16.mxu0 0
      %1063 = vmatpush1.bf16.xpose.msra.mxu0 0
      %1064 = vmatprep.subr.bf16.mxu0 0
      %1065 = vmatpush1.bf16.xpose.msra.mxu0 0
      %1066 = vmatprep.subr.bf16.mxu0 0
      %1067 = vmatpush1.bf16.xpose.msra.mxu0 0
      %1068 = vmatprep.subr.bf16.mxu0 0
      %1069 = vmatpush1.bf16.xpose.msra.mxu0 0
      %1070 = vmatprep.subr.bf16.mxu0 0
      %1071 = vmatpush1.bf16.xpose.msra.mxu0 0
      %1072 = vmatprep.subr.bf16.mxu0 0
      %1073 = vmatpush1.bf16.xpose.msra.mxu0 0
      %1074 = vmatprep.subr.bf16.mxu0 0
      %1075 = vmatpush1.bf16.xpose.msra.mxu0 0
      %1076 = vmatprep.subr.bf16.mxu0 0
      %1077 = vmatpush1.bf16.xpose.msra.mxu0 0
      %1078 = vmatprep.mubr.bf16.mxu0 0
      %1079 = vmatmul.mubr.bf16.gmra.mrb[0].mxu0 %v1041
      %v1080 = vpop.f32.mrb[0].mxu0
      %v1081 = vadd.f32 0.0, %v1080
      %v1082 = vpop.f32.mrb[0].mxu0
      %v1083 = vpop.f32.mrb[0].mxu0
      %v1084 = vpop.f32.mrb[0].mxu0
      %1085 = vdwg.mxu0
      %1087 = vrot.lane.b32.xlu0 %v789, 96
      %v1088 = vpop.permute.xlu0 %1087
      %v1090 = vsel %vm794, %v789, 0
      %v1093 = vsel %vm794, %v1088, 0
      %1095 = vmatprep.subr.bf16.mxu0 0
      %1096 = vmatpush1.bf16.xpose.msra.mxu0 %v1093
      %1097 = vmatprep.subr.bf16.mxu0 0
      %1098 = vmatpush1.bf16.xpose.msra.mxu0 0
      %1099 = vmatprep.subr.bf16.mxu0 0
      %1100 = vmatpush1.bf16.xpose.msra.mxu0 0
      %1101 = vmatprep.subr.bf16.mxu0 0
      %1102 = vmatpush1.bf16.xpose.msra.mxu0 0
      %1103 = vmatprep.subr.bf16.mxu0 0
      %1104 = vmatpush1.bf16.xpose.msra.mxu0 0
      %1105 = vmatprep.subr.bf16.mxu0 0
      %1106 = vmatpush1.bf16.xpose.msra.mxu0 0
      %1107 = vmatprep.subr.bf16.mxu0 0
      %1108 = vmatpush1.bf16.xpose.msra.mxu0 0
      %1109 = vmatprep.subr.bf16.mxu0 0
      %1110 = vmatpush1.bf16.xpose.msra.mxu0 0
      %1111 = vmatprep.subr.bf16.mxu0 0
      %1112 = vmatpush1.bf16.xpose.msra.mxu0 0
      %1113 = vmatprep.subr.bf16.mxu0 0
      %1114 = vmatpush1.bf16.xpose.msra.mxu0 0
      %1115 = vmatprep.subr.bf16.mxu0 0
      %1116 = vmatpush1.bf16.xpose.msra.mxu0 0
      %1117 = vmatprep.subr.bf16.mxu0 0
      %1118 = vmatpush1.bf16.xpose.msra.mxu0 0
      %1119 = vmatprep.subr.bf16.mxu0 0
      %1120 = vmatpush1.bf16.xpose.msra.mxu0 0
      %1121 = vmatprep.subr.bf16.mxu0 0
      %1122 = vmatpush1.bf16.xpose.msra.mxu0 0
      %1123 = vmatprep.subr.bf16.mxu0 0
      %1124 = vmatpush1.bf16.xpose.msra.mxu0 0
      %1125 = vmatprep.subr.bf16.mxu0 0
      %1126 = vmatpush1.bf16.xpose.msra.mxu0 0
      %1127 = vmatprep.mubr.bf16.mxu0 0
      %1128 = vmatmul.mubr.bf16.gmra.mrb[0].mxu0 %v1090
      %v1129 = vpop.f32.mrb[0].mxu0
      %v1130 = vadd.f32 0.0, %v1129
      %v1131 = vpop.f32.mrb[0].mxu0
      %v1132 = vpop.f32.mrb[0].mxu0
      %v1133 = vpop.f32.mrb[0].mxu0
      %1134 = vdwg.mxu0
      %1136 = vrot.lane.b32.xlu0 %v790, 96
      %v1137 = vpop.permute.xlu0 %1136
      %v1139 = vsel %vm794, %v790, 0
      %v1142 = vsel %vm794, %v1137, 0
      %1144 = vmatprep.subr.bf16.mxu0 0
      %1145 = vmatpush1.bf16.xpose.msra.mxu0 %v1142
      %1146 = vmatprep.subr.bf16.mxu0 0
      %1147 = vmatpush1.bf16.xpose.msra.mxu0 0
      %1148 = vmatprep.subr.bf16.mxu0 0
      %1149 = vmatpush1.bf16.xpose.msra.mxu0 0
      %1150 = vmatprep.subr.bf16.mxu0 0
      %1151 = vmatpush1.bf16.xpose.msra.mxu0 0
      %1152 = vmatprep.subr.bf16.mxu0 0
      %1153 = vmatpush1.bf16.xpose.msra.mxu0 0
      %1154 = vmatprep.subr.bf16.mxu0 0
      %1155 = vmatpush1.bf16.xpose.msra.mxu0 0
      %1156 = vmatprep.subr.bf16.mxu0 0
      %1157 = vmatpush1.bf16.xpose.msra.mxu0 0
      %1158 = vmatprep.subr.bf16.mxu0 0
      %1159 = vmatpush1.bf16.xpose.msra.mxu0 0
      %1160 = vmatprep.subr.bf16.mxu0 0
      %1161 = vmatpush1.bf16.xpose.msra.mxu0 0
      %1162 = vmatprep.subr.bf16.mxu0 0
      %1163 = vmatpush1.bf16.xpose.msra.mxu0 0
      %1164 = vmatprep.subr.bf16.mxu0 0
      %1165 = vmatpush1.bf16.xpose.msra.mxu0 0
      %1166 = vmatprep.subr.bf16.mxu0 0
      %1167 = vmatpush1.bf16.xpose.msra.mxu0 0
      %1168 = vmatprep.subr.bf16.mxu0 0
      %1169 = vmatpush1.bf16.xpose.msra.mxu0 0
      %1170 = vmatprep.subr.bf16.mxu0 0
      %1171 = vmatpush1.bf16.xpose.msra.mxu0 0
      %1172 = vmatprep.subr.bf16.mxu0 0
      %1173 = vmatpush1.bf16.xpose.msra.mxu0 0
      %1174 = vmatprep.subr.bf16.mxu0 0
      %1175 = vmatpush1.bf16.xpose.msra.mxu0 0
      %1176 = vmatprep.mubr.bf16.mxu0 0
      %1177 = vmatmul.mubr.bf16.gmra.mrb[0].mxu0 %v1139
      %v1178 = vpop.f32.mrb[0].mxu0
      %v1179 = vadd.f32 0.0, %v1178
      %v1180 = vpop.f32.mrb[0].mxu0
      %v1181 = vpop.f32.mrb[0].mxu0
      %v1182 = vpop.f32.mrb[0].mxu0
      %1183 = vdwg.mxu0
      %v1184 = vlaneseq
      %v1185 = vshrl.u32 %v1184, 7
      %v1186 = vlaneseq
      %v1187 = vand.u32 %v1186, 127
      %vm1188 = vcmp.le.s32.totalorder %v1187, %v1185
      %v1189 = vsel %vm1188, 1, 0
      %vm1190 = vcmp.eq.s32.totalorder %v1189, 1
      %v1191 = vsel %vm1190, %v836, -1e+30
      %v1192 = vsel %vm1190, %v885, -1e+30
      %v1193 = vsel %vm1190, %v934, -1e+30
      %v1194 = vsel %vm1190, %v983, -1e+30
      %v1195 = vsel %vm1190, %v1032, -1e+30
      %v1196 = vsel %vm1190, %v1081, -1e+30
      %v1197 = vsel %vm1190, %v1130, -1e+30
      %v1198 = vsel %vm1190, %v1179, -1e+30
      %v1199 = vsel %vm794, %v1191, -inf
      %1200 = vmax.xlane.f32.xlu0 %v1199
      %v1201 = vpop.xlane.xlu0 %1200
      %v1202 = vsel %vm794, %v1192, -inf
      %1203 = vmax.xlane.f32.xlu0 %v1202
      %v1204 = vpop.xlane.xlu0 %1203
      %v1205 = vsel %vm794, %v1193, -inf
      %1206 = vmax.xlane.f32.xlu0 %v1205
      %v1207 = vpop.xlane.xlu0 %1206
      %v1208 = vsel %vm794, %v1194, -inf
      %1209 = vmax.xlane.f32.xlu0 %v1208
      %v1210 = vpop.xlane.xlu0 %1209
      %v1211 = vsel %vm794, %v1195, -inf
      %1212 = vmax.xlane.f32.xlu0 %v1211
      %v1213 = vpop.xlane.xlu0 %1212
      %v1214 = vsel %vm794, %v1196, -inf
      %1215 = vmax.xlane.f32.xlu0 %v1214
      %v1216 = vpop.xlane.xlu0 %1215
      %v1217 = vsel %vm794, %v1197, -inf
      %1218 = vmax.xlane.f32.xlu0 %v1217
      %v1219 = vpop.xlane.xlu0 %1218
      %v1220 = vsel %vm794, %v1198, -inf
      %1221 = vmax.xlane.f32.xlu0 %v1220
      %v1222 = vpop.xlane.xlu0 %1221
      %v1223 = vsub.f32 %v1191, %v1201
      %v1224 = vsub.f32 %v1192, %v1204
      %v1225 = vsub.f32 %v1193, %v1207
      %v1226 = vsub.f32 %v1194, %v1210
      %v1227 = vsub.f32 %v1195, %v1213
      %v1228 = vsub.f32 %v1196, %v1216
      %v1229 = vsub.f32 %v1197, %v1219
      %v1230 = vsub.f32 %v1198, %v1222
      %v1231 = vmul.f32 %v1223, 1.442695
      %v1232 = vpow.pop %v1231
      %v1233 = vmul.f32 %v1224, 1.442695
      %v1234 = vpow.pop %v1233
      %v1235 = vmul.f32 %v1225, 1.442695
      %v1236 = vpow.pop %v1235
      %v1237 = vmul.f32 %v1226, 1.442695
      %v1238 = vpow.pop %v1237
      %v1239 = vmul.f32 %v1227, 1.442695
      %v1240 = vpow.pop %v1239
      %v1241 = vmul.f32 %v1228, 1.442695
      %v1242 = vpow.pop %v1241
      %v1243 = vmul.f32 %v1229, 1.442695
      %v1244 = vpow.pop %v1243
      %v1245 = vmul.f32 %v1230, 1.442695
      %v1246 = vpow.pop %v1245
      %v1247 = vsel %vm794, %v1232, 0.0
      %1248 = vadd.xlane.f32.xlu0 %v1247
      %v1249 = vpop.xlane.xlu0 %1248
      %v1250 = vsel %vm794, %v1234, 0.0
      %1251 = vadd.xlane.f32.xlu0 %v1250
      %v1252 = vpop.xlane.xlu0 %1251
      %v1253 = vsel %vm794, %v1236, 0.0
      %1254 = vadd.xlane.f32.xlu0 %v1253
      %v1255 = vpop.xlane.xlu0 %1254
      %v1256 = vsel %vm794, %v1238, 0.0
      %1257 = vadd.xlane.f32.xlu0 %v1256
      %v1258 = vpop.xlane.xlu0 %1257
      %v1259 = vsel %vm794, %v1240, 0.0
      %1260 = vadd.xlane.f32.xlu0 %v1259
      %v1261 = vpop.xlane.xlu0 %1260
      %v1262 = vsel %vm794, %v1242, 0.0
      %1263 = vadd.xlane.f32.xlu0 %v1262
      %v1264 = vpop.xlane.xlu0 %1263
      %v1265 = vsel %vm794, %v1244, 0.0
      %1266 = vadd.xlane.f32.xlu0 %v1265
      %v1267 = vpop.xlane.xlu0 %1266
      %v1268 = vsel %vm794, %v1246, 0.0
      %1269 = vadd.xlane.f32.xlu0 %v1268
      %v1270 = vpop.xlane.xlu0 %1269
      %v1271 = vpack.c.bf16 %v1232, %v1232
      %v1272 = vpack.c.bf16 %v1234, %v1234
      %v1273 = vpack.c.bf16 %v1236, %v1236
      %v1274 = vpack.c.bf16 %v1238, %v1238
      %v1275 = vpack.c.bf16 %v1240, %v1240
      %v1276 = vpack.c.bf16 %v1242, %v1242
      %v1277 = vpack.c.bf16 %v1244, %v1244
      %v1278 = vpack.c.bf16 %v1246, %v1246
      %1279 = vrot.lane.b32.xlu0 %v783, 64
      %v1280 = vpop.permute.xlu0 %1279
      %v1282 = vsel %vm794, %v1271, 0
      %vm1284 = vcmask 1043456
      %v1286 = vsel %vm1284, %v1280, 0
      %1288 = vmatprep.subr.bf16.mxu0 0
      %1289 = vmatpush1.bf16.msra.mxu0 %v1286
      %1290 = vmatprep.subr.bf16.mxu0 0
      %1291 = vmatpush1.bf16.msra.mxu0 0
      %1292 = vmatprep.subr.bf16.mxu0 0
      %1293 = vmatpush1.bf16.msra.mxu0 0
      %1294 = vmatprep.subr.bf16.mxu0 0
      %1295 = vmatpush1.bf16.msra.mxu0 0
      %1296 = vmatprep.subr.bf16.mxu0 0
      %1297 = vmatpush1.bf16.msra.mxu0 0
      %1298 = vmatprep.subr.bf16.mxu0 0
      %1299 = vmatpush1.bf16.msra.mxu0 0
      %1300 = vmatprep.subr.bf16.mxu0 0
      %1301 = vmatpush1.bf16.msra.mxu0 0
      %1302 = vmatprep.subr.bf16.mxu0 0
      %1303 = vmatpush1.bf16.msra.mxu0 0
      %1304 = vmatprep.subr.bf16.mxu0 0
      %1305 = vmatpush1.bf16.msra.mxu0 0
      %1306 = vmatprep.subr.bf16.mxu0 0
      %1307 = vmatpush1.bf16.msra.mxu0 0
      %1308 = vmatprep.subr.bf16.mxu0 0
      %1309 = vmatpush1.bf16.msra.mxu0 0
      %1310 = vmatprep.subr.bf16.mxu0 0
      %1311 = vmatpush1.bf16.msra.mxu0 0
      %1312 = vmatprep.subr.bf16.mxu0 0
      %1313 = vmatpush1.bf16.msra.mxu0 0
      %1314 = vmatprep.subr.bf16.mxu0 0
      %1315 = vmatpush1.bf16.msra.mxu0 0
      %1316 = vmatprep.subr.bf16.mxu0 0
      %1317 = vmatpush1.bf16.msra.mxu0 0
      %1318 = vmatprep.subr.bf16.mxu0 0
      %1319 = vmatpush1.bf16.msra.mxu0 0
      %1320 = vmatprep.mubr.bf16.mxu0 0
      %1321 = vmatmul.mubr.bf16.gmra.mrb[0].mxu0 %v1282
      %v1322 = vpop.f32.mrb[0].mxu0
      %v1323 = vadd.f32 0.0, %v1322
      %v1324 = vpop.f32.mrb[0].mxu0
      %v1325 = vpop.f32.mrb[0].mxu0
      %v1326 = vpop.f32.mrb[0].mxu0
      %1327 = vdwg.mxu0
      %1328 = vrot.lane.b32.xlu0 %v784, 64
      %v1329 = vpop.permute.xlu0 %1328
      %v1331 = vsel %vm794, %v1272, 0
      %v1334 = vsel %vm1284, %v1329, 0
      %1336 = vmatprep.subr.bf16.mxu0 0
      %1337 = vmatpush1.bf16.msra.mxu0 %v1334
      %1338 = vmatprep.subr.bf16.mxu0 0
      %1339 = vmatpush1.bf16.msra.mxu0 0
      %1340 = vmatprep.subr.bf16.mxu0 0
      %1341 = vmatpush1.bf16.msra.mxu0 0
      %1342 = vmatprep.subr.bf16.mxu0 0
      %1343 = vmatpush1.bf16.msra.mxu0 0
      %1344 = vmatprep.subr.bf16.mxu0 0
      %1345 = vmatpush1.bf16.msra.mxu0 0
      %1346 = vmatprep.subr.bf16.mxu0 0
      %1347 = vmatpush1.bf16.msra.mxu0 0
      %1348 = vmatprep.subr.bf16.mxu0 0
      %1349 = vmatpush1.bf16.msra.mxu0 0
      %1350 = vmatprep.subr.bf16.mxu0 0
      %1351 = vmatpush1.bf16.msra.mxu0 0
      %1352 = vmatprep.subr.bf16.mxu0 0
      %1353 = vmatpush1.bf16.msra.mxu0 0
      %1354 = vmatprep.subr.bf16.mxu0 0
      %1355 = vmatpush1.bf16.msra.mxu0 0
      %1356 = vmatprep.subr.bf16.mxu0 0
      %1357 = vmatpush1.bf16.msra.mxu0 0
      %1358 = vmatprep.subr.bf16.mxu0 0
      %1359 = vmatpush1.bf16.msra.mxu0 0
      %1360 = vmatprep.subr.bf16.mxu0 0
      %1361 = vmatpush1.bf16.msra.mxu0 0
      %1362 = vmatprep.subr.bf16.mxu0 0
      %1363 = vmatpush1.bf16.msra.mxu0 0
      %1364 = vmatprep.subr.bf16.mxu0 0
      %1365 = vmatpush1.bf16.msra.mxu0 0
      %1366 = vmatprep.subr.bf16.mxu0 0
      %1367 = vmatpush1.bf16.msra.mxu0 0
      %1368 = vmatprep.mubr.bf16.mxu0 0
      %1369 = vmatmul.mubr.bf16.gmra.mrb[0].mxu0 %v1331
      %v1370 = vpop.f32.mrb[0].mxu0
      %v1371 = vadd.f32 0.0, %v1370
      %v1372 = vpop.f32.mrb[0].mxu0
      %v1373 = vpop.f32.mrb[0].mxu0
      %v1374 = vpop.f32.mrb[0].mxu0
      %1375 = vdwg.mxu0
      %1376 = vrot.lane.b32.xlu0 %v785, 64
      %v1377 = vpop.permute.xlu0 %1376
      %v1379 = vsel %vm794, %v1273, 0
      %v1382 = vsel %vm1284, %v1377, 0
      %1384 = vmatprep.subr.bf16.mxu0 0
      %1385 = vmatpush1.bf16.msra.mxu0 %v1382
      %1386 = vmatprep.subr.bf16.mxu0 0
      %1387 = vmatpush1.bf16.msra.mxu0 0
      %1388 = vmatprep.subr.bf16.mxu0 0
      %1389 = vmatpush1.bf16.msra.mxu0 0
      %1390 = vmatprep.subr.bf16.mxu0 0
      %1391 = vmatpush1.bf16.msra.mxu0 0
      %1392 = vmatprep.subr.bf16.mxu0 0
      %1393 = vmatpush1.bf16.msra.mxu0 0
      %1394 = vmatprep.subr.bf16.mxu0 0
      %1395 = vmatpush1.bf16.msra.mxu0 0
      %1396 = vmatprep.subr.bf16.mxu0 0
      %1397 = vmatpush1.bf16.msra.mxu0 0
      %1398 = vmatprep.subr.bf16.mxu0 0
      %1399 = vmatpush1.bf16.msra.mxu0 0
      %1400 = vmatprep.subr.bf16.mxu0 0
      %1401 = vmatpush1.bf16.msra.mxu0 0
      %1402 = vmatprep.subr.bf16.mxu0 0
      %1403 = vmatpush1.bf16.msra.mxu0 0
      %1404 = vmatprep.subr.bf16.mxu0 0
      %1405 = vmatpush1.bf16.msra.mxu0 0
      %1406 = vmatprep.subr.bf16.mxu0 0
      %1407 = vmatpush1.bf16.msra.mxu0 0
      %1408 = vmatprep.subr.bf16.mxu0 0
      %1409 = vmatpush1.bf16.msra.mxu0 0
      %1410 = vmatprep.subr.bf16.mxu0 0
      %1411 = vmatpush1.bf16.msra.mxu0 0
      %1412 = vmatprep.subr.bf16.mxu0 0
      %1413 = vmatpush1.bf16.msra.mxu0 0
      %1414 = vmatprep.subr.bf16.mxu0 0
      %1415 = vmatpush1.bf16.msra.mxu0 0
      %1416 = vmatprep.mubr.bf16.mxu0 0
      %1417 = vmatmul.mubr.bf16.gmra.mrb[0].mxu0 %v1379
      %v1418 = vpop.f32.mrb[0].mxu0
      %v1419 = vadd.f32 0.0, %v1418
      %v1420 = vpop.f32.mrb[0].mxu0
      %v1421 = vpop.f32.mrb[0].mxu0
      %v1422 = vpop.f32.mrb[0].mxu0
      %1423 = vdwg.mxu0
      %1424 = vrot.lane.b32.xlu0 %v786, 64
      %v1425 = vpop.permute.xlu0 %1424
      %v1427 = vsel %vm794, %v1274, 0
      %v1430 = vsel %vm1284, %v1425, 0
      %1432 = vmatprep.subr.bf16.mxu0 0
      %1433 = vmatpush1.bf16.msra.mxu0 %v1430
      %1434 = vmatprep.subr.bf16.mxu0 0
      %1435 = vmatpush1.bf16.msra.mxu0 0
      %1436 = vmatprep.subr.bf16.mxu0 0
      %1437 = vmatpush1.bf16.msra.mxu0 0
      %1438 = vmatprep.subr.bf16.mxu0 0
      %1439 = vmatpush1.bf16.msra.mxu0 0
      %1440 = vmatprep.subr.bf16.mxu0 0
      %1441 = vmatpush1.bf16.msra.mxu0 0
      %1442 = vmatprep.subr.bf16.mxu0 0
      %1443 = vmatpush1.bf16.msra.mxu0 0
      %1444 = vmatprep.subr.bf16.mxu0 0
      %1445 = vmatpush1.bf16.msra.mxu0 0
      %1446 = vmatprep.subr.bf16.mxu0 0
      %1447 = vmatpush1.bf16.msra.mxu0 0
      %1448 = vmatprep.subr.bf16.mxu0 0
      %1449 = vmatpush1.bf16.msra.mxu0 0
      %1450 = vmatprep.subr.bf16.mxu0 0
      %1451 = vmatpush1.bf16.msra.mxu0 0
      %1452 = vmatprep.subr.bf16.mxu0 0
      %1453 = vmatpush1.bf16.msra.mxu0 0
      %1454 = vmatprep.subr.bf16.mxu0 0
      %1455 = vmatpush1.bf16.msra.mxu0 0
      %1456 = vmatprep.subr.bf16.mxu0 0
      %1457 = vmatpush1.bf16.msra.mxu0 0
      %1458 = vmatprep.subr.bf16.mxu0 0
      %1459 = vmatpush1.bf16.msra.mxu0 0
      %1460 = vmatprep.subr.bf16.mxu0 0
      %1461 = vmatpush1.bf16.msra.mxu0 0
      %1462 = vmatprep.subr.bf16.mxu0 0
      %1463 = vmatpush1.bf16.msra.mxu0 0
      %1464 = vmatprep.mubr.bf16.mxu0 0
      %1465 = vmatmul.mubr.bf16.gmra.mrb[0].mxu0 %v1427
      %v1466 = vpop.f32.mrb[0].mxu0
      %v1467 = vadd.f32 0.0, %v1466
      %v1468 = vpop.f32.mrb[0].mxu0
      %v1469 = vpop.f32.mrb[0].mxu0
      %v1470 = vpop.f32.mrb[0].mxu0
      %1471 = vdwg.mxu0
      %1472 = vrot.lane.b32.xlu0 %v787, 64
      %v1473 = vpop.permute.xlu0 %1472
      %v1475 = vsel %vm794, %v1275, 0
      %v1478 = vsel %vm1284, %v1473, 0
      %1480 = vmatprep.subr.bf16.mxu0 0
      %1481 = vmatpush1.bf16.msra.mxu0 %v1478
      %1482 = vmatprep.subr.bf16.mxu0 0
      %1483 = vmatpush1.bf16.msra.mxu0 0
      %1484 = vmatprep.subr.bf16.mxu0 0
      %1485 = vmatpush1.bf16.msra.mxu0 0
      %1486 = vmatprep.subr.bf16.mxu0 0
      %1487 = vmatpush1.bf16.msra.mxu0 0
      %1488 = vmatprep.subr.bf16.mxu0 0
      %1489 = vmatpush1.bf16.msra.mxu0 0
      %1490 = vmatprep.subr.bf16.mxu0 0
      %1491 = vmatpush1.bf16.msra.mxu0 0
      %1492 = vmatprep.subr.bf16.mxu0 0
      %1493 = vmatpush1.bf16.msra.mxu0 0
      %1494 = vmatprep.subr.bf16.mxu0 0
      %1495 = vmatpush1.bf16.msra.mxu0 0
      %1496 = vmatprep.subr.bf16.mxu0 0
      %1497 = vmatpush1.bf16.msra.mxu0 0
      %1498 = vmatprep.subr.bf16.mxu0 0
      %1499 = vmatpush1.bf16.msra.mxu0 0
      %1500 = vmatprep.subr.bf16.mxu0 0
      %1501 = vmatpush1.bf16.msra.mxu0 0
      %1502 = vmatprep.subr.bf16.mxu0 0
      %1503 = vmatpush1.bf16.msra.mxu0 0
      %1504 = vmatprep.subr.bf16.mxu0 0
      %1505 = vmatpush1.bf16.msra.mxu0 0
      %1506 = vmatprep.subr.bf16.mxu0 0
      %1507 = vmatpush1.bf16.msra.mxu0 0
      %1508 = vmatprep.subr.bf16.mxu0 0
      %1509 = vmatpush1.bf16.msra.mxu0 0
      %1510 = vmatprep.subr.bf16.mxu0 0
      %1511 = vmatpush1.bf16.msra.mxu0 0
      %1512 = vmatprep.mubr.bf16.mxu0 0
      %1513 = vmatmul.mubr.bf16.gmra.mrb[0].mxu0 %v1475
      %v1514 = vpop.f32.mrb[0].mxu0
      %v1515 = vadd.f32 0.0, %v1514
      %v1516 = vpop.f32.mrb[0].mxu0
      %v1517 = vpop.f32.mrb[0].mxu0
      %v1518 = vpop.f32.mrb[0].mxu0
      %1519 = vdwg.mxu0
      %1520 = vrot.lane.b32.xlu0 %v788, 64
      %v1521 = vpop.permute.xlu0 %1520
      %v1523 = vsel %vm794, %v1276, 0
      %v1526 = vsel %vm1284, %v1521, 0
      %1528 = vmatprep.subr.bf16.mxu0 0
      %1529 = vmatpush1.bf16.msra.mxu0 %v1526
      %1530 = vmatprep.subr.bf16.mxu0 0
      %1531 = vmatpush1.bf16.msra.mxu0 0
      %1532 = vmatprep.subr.bf16.mxu0 0
      %1533 = vmatpush1.bf16.msra.mxu0 0
      %1534 = vmatprep.subr.bf16.mxu0 0
      %1535 = vmatpush1.bf16.msra.mxu0 0
      %1536 = vmatprep.subr.bf16.mxu0 0
      %1537 = vmatpush1.bf16.msra.mxu0 0
      %1538 = vmatprep.subr.bf16.mxu0 0
      %1539 = vmatpush1.bf16.msra.mxu0 0
      %1540 = vmatprep.subr.bf16.mxu0 0
      %1541 = vmatpush1.bf16.msra.mxu0 0
      %1542 = vmatprep.subr.bf16.mxu0 0
      %1543 = vmatpush1.bf16.msra.mxu0 0
      %1544 = vmatprep.subr.bf16.mxu0 0
      %1545 = vmatpush1.bf16.msra.mxu0 0
      %1546 = vmatprep.subr.bf16.mxu0 0
      %1547 = vmatpush1.bf16.msra.mxu0 0
      %1548 = vmatprep.subr.bf16.mxu0 0
      %1549 = vmatpush1.bf16.msra.mxu0 0
      %1550 = vmatprep.subr.bf16.mxu0 0
      %1551 = vmatpush1.bf16.msra.mxu0 0
      %1552 = vmatprep.subr.bf16.mxu0 0
      %1553 = vmatpush1.bf16.msra.mxu0 0
      %1554 = vmatprep.subr.bf16.mxu0 0
      %1555 = vmatpush1.bf16.msra.mxu0 0
      %1556 = vmatprep.subr.bf16.mxu0 0
      %1557 = vmatpush1.bf16.msra.mxu0 0
      %1558 = vmatprep.subr.bf16.mxu0 0
      %1559 = vmatpush1.bf16.msra.mxu0 0
      %1560 = vmatprep.mubr.bf16.mxu0 0
      %1561 = vmatmul.mubr.bf16.gmra.mrb[0].mxu0 %v1523
      %v1562 = vpop.f32.mrb[0].mxu0
      %v1563 = vadd.f32 0.0, %v1562
      %v1564 = vpop.f32.mrb[0].mxu0
      %v1565 = vpop.f32.mrb[0].mxu0
      %v1566 = vpop.f32.mrb[0].mxu0
      %1567 = vdwg.mxu0
      %1568 = vrot.lane.b32.xlu0 %v789, 64
      %v1569 = vpop.permute.xlu0 %1568
      %v1571 = vsel %vm794, %v1277, 0
      %v1574 = vsel %vm1284, %v1569, 0
      %1576 = vmatprep.subr.bf16.mxu0 0
      %1577 = vmatpush1.bf16.msra.mxu0 %v1574
      %1578 = vmatprep.subr.bf16.mxu0 0
      %1579 = vmatpush1.bf16.msra.mxu0 0
      %1580 = vmatprep.subr.bf16.mxu0 0
      %1581 = vmatpush1.bf16.msra.mxu0 0
      %1582 = vmatprep.subr.bf16.mxu0 0
      %1583 = vmatpush1.bf16.msra.mxu0 0
      %1584 = vmatprep.subr.bf16.mxu0 0
      %1585 = vmatpush1.bf16.msra.mxu0 0
      %1586 = vmatprep.subr.bf16.mxu0 0
      %1587 = vmatpush1.bf16.msra.mxu0 0
      %1588 = vmatprep.subr.bf16.mxu0 0
      %1589 = vmatpush1.bf16.msra.mxu0 0
      %1590 = vmatprep.subr.bf16.mxu0 0
      %1591 = vmatpush1.bf16.msra.mxu0 0
      %1592 = vmatprep.subr.bf16.mxu0 0
      %1593 = vmatpush1.bf16.msra.mxu0 0
      %1594 = vmatprep.subr.bf16.mxu0 0
      %1595 = vmatpush1.bf16.msra.mxu0 0
      %1596 = vmatprep.subr.bf16.mxu0 0
      %1597 = vmatpush1.bf16.msra.mxu0 0
      %1598 = vmatprep.subr.bf16.mxu0 0
      %1599 = vmatpush1.bf16.msra.mxu0 0
      %1600 = vmatprep.subr.bf16.mxu0 0
      %1601 = vmatpush1.bf16.msra.mxu0 0
      %1602 = vmatprep.subr.bf16.mxu0 0
      %1603 = vmatpush1.bf16.msra.mxu0 0
      %1604 = vmatprep.subr.bf16.mxu0 0
      %1605 = vmatpush1.bf16.msra.mxu0 0
      %1606 = vmatprep.subr.bf16.mxu0 0
      %1607 = vmatpush1.bf16.msra.mxu0 0
      %1608 = vmatprep.mubr.bf16.mxu0 0
      %1609 = vmatmul.mubr.bf16.gmra.mrb[0].mxu0 %v1571
      %v1610 = vpop.f32.mrb[0].mxu0
      %v1611 = vadd.f32 0.0, %v1610
      %v1612 = vpop.f32.mrb[0].mxu0
      %v1613 = vpop.f32.mrb[0].mxu0
      %v1614 = vpop.f32.mrb[0].mxu0
      %1615 = vdwg.mxu0
      %1616 = vrot.lane.b32.xlu0 %v790, 64
      %v1617 = vpop.permute.xlu0 %1616
      %v1619 = vsel %vm794, %v1278, 0
      %v1622 = vsel %vm1284, %v1617, 0
      %1624 = vmatprep.subr.bf16.mxu0 0
      %1625 = vmatpush1.bf16.msra.mxu0 %v1622
      %1626 = vmatprep.subr.bf16.mxu0 0
      %1627 = vmatpush1.bf16.msra.mxu0 0
      %1628 = vmatprep.subr.bf16.mxu0 0
      %1629 = vmatpush1.bf16.msra.mxu0 0
      %1630 = vmatprep.subr.bf16.mxu0 0
      %1631 = vmatpush1.bf16.msra.mxu0 0
      %1632 = vmatprep.subr.bf16.mxu0 0
      %1633 = vmatpush1.bf16.msra.mxu0 0
      %1634 = vmatprep.subr.bf16.mxu0 0
      %1635 = vmatpush1.bf16.msra.mxu0 0
      %1636 = vmatprep.subr.bf16.mxu0 0
      %1637 = vmatpush1.bf16.msra.mxu0 0
      %1638 = vmatprep.subr.bf16.mxu0 0
      %1639 = vmatpush1.bf16.msra.mxu0 0
      %1640 = vmatprep.subr.bf16.mxu0 0
      %1641 = vmatpush1.bf16.msra.mxu0 0
      %1642 = vmatprep.subr.bf16.mxu0 0
      %1643 = vmatpush1.bf16.msra.mxu0 0
      %1644 = vmatprep.subr.bf16.mxu0 0
      %1645 = vmatpush1.bf16.msra.mxu0 0
      %1646 = vmatprep.subr.bf16.mxu0 0
      %1647 = vmatpush1.bf16.msra.mxu0 0
      %1648 = vmatprep.subr.bf16.mxu0 0
      %1649 = vmatpush1.bf16.msra.mxu0 0
      %1650 = vmatprep.subr.bf16.mxu0 0
      %1651 = vmatpush1.bf16.msra.mxu0 0
      %1652 = vmatprep.subr.bf16.mxu0 0
      %1653 = vmatpush1.bf16.msra.mxu0 0
      %1654 = vmatprep.subr.bf16.mxu0 0
      %1655 = vmatpush1.bf16.msra.mxu0 0
      %1656 = vmatprep.mubr.bf16.mxu0 0
      %1657 = vmatmul.mubr.bf16.gmra.mrb[0].mxu0 %v1619
      %v1658 = vpop.f32.mrb[0].mxu0
      %v1659 = vadd.f32 0.0, %v1658
      %v1660 = vpop.f32.mrb[0].mxu0
      %v1661 = vpop.f32.mrb[0].mxu0
      %v1662 = vpop.f32.mrb[0].mxu0
      %1663 = vdwg.mxu0
      %v1664 = vrcp.pop %v1249
      %v1665 = vrcp.pop %v1252
      %v1666 = vrcp.pop %v1255
      %v1667 = vrcp.pop %v1258
      %v1668 = vrcp.pop %v1261
      %v1669 = vrcp.pop %v1264
      %v1670 = vrcp.pop %v1267
      %v1671 = vrcp.pop %v1270
      %v1672 = vmul.f32 %v1323, %v1664
      %v1673 = vmul.f32 %v1371, %v1665
      %v1674 = vmul.f32 %v1419, %v1666
      %v1675 = vmul.f32 %v1467, %v1667
      %v1676 = vmul.f32 %v1515, %v1668
      %v1677 = vmul.f32 %v1563, %v1669
      %v1678 = vmul.f32 %v1611, %v1670
      %v1679 = vmul.f32 %v1659, %v1671
      %1682 = vrot.lane.b32.xlu0 %v1674, 8
      %v1683 = vpop.permute.xlu0 %1682
      %1684 = vrot.lane.b32.xlu0 %v1675, 8
      %v1685 = vpop.permute.xlu0 %1684
      %1690 = vrot.lane.b32.xlu0 %v1676, 16
      %v1691 = vpop.permute.xlu0 %1690
      %1692 = vrot.lane.b32.xlu0 %v1677, 16
      %v1693 = vpop.permute.xlu0 %1692
      %1698 = vrot.lane.b32.xlu0 %v1678, 24
      %v1699 = vpop.permute.xlu0 %1698
      %1700 = vrot.lane.b32.xlu0 %v1679, 24
      %v1701 = vpop.permute.xlu0 %1700
      %v1704 = vsel %vm794, %v1672, %v1683
      %v1705 = vsel %vm794, %v1673, %v1685
      %vm1706 = vcmask 130048
      %v1707 = vsel %vm1706, %v1704, %v1691
      %v1708 = vsel %vm1706, %v1705, %v1693
      %vm1709 = vcmask 195584
      %v1710 = vsel %vm1709, %v1707, %v1699
      %v1711 = vsel %vm1709, %v1708, %v1701
      %v1712 = vpack.c.bf16 %v1711, %v1710
      %v1713 = vld [vmem:[%s647] sm:$0xf]
      %v1714 = vld [vmem:[%s647 + $0x4] sm:$0xf]
      %v1715 = vld [vmem:[%s647 + $0x8] sm:$0xf]
      %v1716 = vld [vmem:[%s647 + $0xc] sm:$0xf]
      %v1717 = vld [vmem:[%s650] sm:$0x1]
      %v1719 = vlaneseq
      %v1720 = vshrl.u32 %v1719, 7
      %v1721 = vsub.s32 0, %v1720
      %v1722 = vrot.slane %v1717, %v1721
      %v1728 = vunpack.c.l.b16 %v1713
      %v1729 = vunpack.c.l.b16 %v1714
      %v1730 = vunpack.c.l.b16 %v1715
      %v1731 = vunpack.c.l.b16 %v1716
      %v1732 = vpack.c.b16 %v1729, %v1728
      %v1733 = vpack.c.b16 %v1731, %v1730
      %v1737 = vsel %vm718, %v1712, 0
      %1739 = vmatprep.subr.bf16.mxu0 0
      %1740 = vmatpush1.bf16.msra.mxu0 %v1732
      %1741 = vmatprep.subr.bf16.mxu0 0
      %1742 = vmatpush1.bf16.msra.mxu0 %v1733
      %1743 = vmatprep.subr.bf16.mxu0 0
      %1744 = vmatpush1.bf16.msra.mxu0 0
      %1745 = vmatprep.subr.bf16.mxu0 0
      %1746 = vmatpush1.bf16.msra.mxu0 0
      %1747 = vmatprep.subr.bf16.mxu0 0
      %1748 = vmatpush1.bf16.msra.mxu0 0
      %1749 = vmatprep.subr.bf16.mxu0 0
      %1750 = vmatpush1.bf16.msra.mxu0 0
      %1751 = vmatprep.subr.bf16.mxu0 0
      %1752 = vmatpush1.bf16.msra.mxu0 0
      %1753 = vmatprep.subr.bf16.mxu0 0
      %1754 = vmatpush1.bf16.msra.mxu0 0
      %1755 = vmatprep.subr.bf16.mxu0 0
      %1756 = vmatpush1.bf16.msra.mxu0 0
      %1757 = vmatprep.subr.bf16.mxu0 0
      %1758 = vmatpush1.bf16.msra.mxu0 0
      %1759 = vmatprep.subr.bf16.mxu0 0
      %1760 = vmatpush1.bf16.msra.mxu0 0
      %1761 = vmatprep.subr.bf16.mxu0 0
      %1762 = vmatpush1.bf16.msra.mxu0 0
      %1763 = vmatprep.subr.bf16.mxu0 0
      %1764 = vmatpush1.bf16.msra.mxu0 0
      %1765 = vmatprep.subr.bf16.mxu0 0
      %1766 = vmatpush1.bf16.msra.mxu0 0
      %1767 = vmatprep.subr.bf16.mxu0 0
      %1768 = vmatpush1.bf16.msra.mxu0 0
      %1769 = vmatprep.subr.bf16.mxu0 0
      %1770 = vmatpush1.bf16.msra.mxu0 0
      %1771 = vmatprep.mubr.bf16.mxu0 0
      %1772 = vmatmul.mubr.bf16.gmra.mrb[0].mxu0 %v1737
      %v1773 = vpop.f32.mrb[0].mxu0
      %v1774 = vadd.f32 %v1722, %v1773
      %v1775 = vpop.f32.mrb[0].mxu0
      %v1776 = vpop.f32.mrb[0].mxu0
      %v1777 = vadd.f32 %v1722, %v1776
      %v1778 = vpop.f32.mrb[0].mxu0
      %1779 = vdwg.mxu0
      %v1780 = vadd.f32 %v692, %v1774
      %v1781 = vadd.f32 %v693, %v1777
      %v1782 = vld [vmem:[%s653] sm:$0x1]
      %v1783 = vld [vmem:[%s656] sm:$0x1]
      %v1784 = vsel %vm718, %v1780, 0.0
      %1785 = vadd.xlane.f32.xlu0 %v1784
      %v1786 = vpop.xlane.xlu0 %1785
      %v1787 = vsel %vm718, %v1781, 0.0
      %1788 = vadd.xlane.f32.xlu0 %v1787
      %v1789 = vpop.xlane.xlu0 %1788
      %v1790 = vrcp.pop 32.0
      %v1791 = vmul.f32 %v1786, %v1790
      %v1792 = vmul.f32 %v1789, %v1790
      %v1793 = vsub.f32 %v1780, %v1791
      %v1794 = vsub.f32 %v1781, %v1792
      %v1795 = vmul.f32 %v1793, %v1793
      %v1796 = vmul.f32 %v1794, %v1794
      %v1797 = vsel %vm718, %v1795, 0.0
      %1798 = vadd.xlane.f32.xlu0 %v1797
      %v1799 = vpop.xlane.xlu0 %1798
      %v1800 = vsel %vm718, %v1796, 0.0
      %1801 = vadd.xlane.f32.xlu0 %v1800
      %v1802 = vpop.xlane.xlu0 %1801
      %v1803 = vmul.f32 %v1799, %v1790
      %v1804 = vmul.f32 %v1802, %v1790
      %v1805 = vadd.f32 %v1803, 1e-05
      %v1806 = vadd.f32 %v1804, 1e-05
      %v1807 = vrsqrt.pop %v1805
      %v1808 = vrsqrt.pop %v1806
      %v1809 = vmul.f32 %v1793, %v1807
      %v1810 = vmul.f32 %v1794, %v1808
      %v1812 = vlaneseq
      %v1813 = vshrl.u32 %v1812, 7
      %v1814 = vsub.s32 0, %v1813
      %v1815 = vrot.slane %v1782, %v1814
      %v1817 = vmul.f32 %v1809, %v1815
      %v1818 = vmul.f32 %v1810, %v1815
      %v1820 = vlaneseq
      %v1821 = vshrl.u32 %v1820, 7
      %v1822 = vsub.s32 0, %v1821
      %v1823 = vrot.slane %v1783, %v1822
      %v1825 = vadd.f32 %v1817, %v1823
      %v1826 = vadd.f32 %v1818, %v1823
      %v1827 = vpack.c.bf16 %v1826, %v1825
      %v1828 = vld [vmem:[%s667] sm:$0xf]
      %v1829 = vld [vmem:[%s667 + $0x4] sm:$0xf]
      %v1830 = vld [vmem:[%s667 + $0x8] sm:$0xf]
      %v1831 = vld [vmem:[%s667 + $0xc] sm:$0xf]
      %v1832 = vld [vmem:[%s670] sm:$0x1]
      %v1834 = vlaneseq
      %v1835 = vshrl.u32 %v1834, 7
      %v1836 = vsub.s32 0, %v1835
      %v1837 = vrot.slane %v1832, %v1836
      %v1843 = vunpack.c.l.b16 %v1828
      %v1844 = vunpack.c.l.b16 %v1829
      %v1845 = vunpack.c.l.b16 %v1830
      %v1846 = vunpack.c.l.b16 %v1831
      %v1847 = vpack.c.b16 %v1844, %v1843
      %v1848 = vpack.c.b16 %v1846, %v1845
      %v1852 = vsel %vm718, %v1827, 0
      %1854 = vmatprep.subr.bf16.mxu0 0
      %1855 = vmatpush1.bf16.msra.mxu0 %v1847
      %1856 = vmatprep.subr.bf16.mxu0 0
      %1857 = vmatpush1.bf16.msra.mxu0 %v1848
      %1858 = vmatprep.subr.bf16.mxu0 0
      %1859 = vmatpush1.bf16.msra.mxu0 0
      %1860 = vmatprep.subr.bf16.mxu0 0
      %1861 = vmatpush1.bf16.msra.mxu0 0
      %1862 = vmatprep.subr.bf16.mxu0 0
      %1863 = vmatpush1.bf16.msra.mxu0 0
      %1864 = vmatprep.subr.bf16.mxu0 0
      %1865 = vmatpush1.bf16.msra.mxu0 0
      %1866 = vmatprep.subr.bf16.mxu0 0
      %1867 = vmatpush1.bf16.msra.mxu0 0
      %1868 = vmatprep.subr.bf16.mxu0 0
      %1869 = vmatpush1.bf16.msra.mxu0 0
      %1870 = vmatprep.subr.bf16.mxu0 0
      %1871 = vmatpush1.bf16.msra.mxu0 0
      %1872 = vmatprep.subr.bf16.mxu0 0
      %1873 = vmatpush1.bf16.msra.mxu0 0
      %1874 = vmatprep.subr.bf16.mxu0 0
      %1875 = vmatpush1.bf16.msra.mxu0 0
      %1876 = vmatprep.subr.bf16.mxu0 0
      %1877 = vmatpush1.bf16.msra.mxu0 0
      %1878 = vmatprep.subr.bf16.mxu0 0
      %1879 = vmatpush1.bf16.msra.mxu0 0
      %1880 = vmatprep.subr.bf16.mxu0 0
      %1881 = vmatpush1.bf16.msra.mxu0 0
      %1882 = vmatprep.subr.bf16.mxu0 0
      %1883 = vmatpush1.bf16.msra.mxu0 0
      %1884 = vmatprep.subr.bf16.mxu0 0
      %1885 = vmatpush1.bf16.msra.mxu0 0
      %1886 = vmatprep.mubr.bf16.mxu0 0
      %1887 = vmatmul.mubr.bf16.gmra.mrb[0].mxu0 %v1852
      %v1888 = vpop.f32.mrb[0].mxu0
      %v1889 = vadd.f32 %v1837, %v1888
      %v1890 = vpop.f32.mrb[0].mxu0
      %v1891 = vpop.f32.mrb[0].mxu0
      %v1892 = vadd.f32 %v1837, %v1891
      %v1893 = vpop.f32.mrb[0].mxu0
      %1894 = vdwg.mxu0
      %v1895 = vmax.f32 %v1889, 0.0
      %v1896 = vmax.f32 %v1892, 0.0
      %v1897 = vpack.c.bf16 %v1896, %v1895
      %v1898 = vld [vmem:[%s675] sm:$0xf]
      %v1899 = vld [vmem:[%s675 + $0x4] sm:$0xf]
      %v1900 = vld [vmem:[%s675 + $0x8] sm:$0xf]
      %v1901 = vld [vmem:[%s675 + $0xc] sm:$0xf]
      %v1902 = vld [vmem:[%s675 + $0x10] sm:$0xf]
      %v1903 = vld [vmem:[%s675 + $0x14] sm:$0xf]
      %v1904 = vld [vmem:[%s675 + $0x18] sm:$0xf]
      %v1905 = vld [vmem:[%s675 + $0x1c] sm:$0xf]
      %v1906 = vld [vmem:[%s675 + $0x20] sm:$0xf]
      %v1907 = vld [vmem:[%s675 + $0x24] sm:$0xf]
      %v1908 = vld [vmem:[%s675 + $0x28] sm:$0xf]
      %v1909 = vld [vmem:[%s675 + $0x2c] sm:$0xf]
      %v1910 = vld [vmem:[%s675 + $0x30] sm:$0xf]
      %v1911 = vld [vmem:[%s675 + $0x34] sm:$0xf]
      %v1912 = vld [vmem:[%s675 + $0x38] sm:$0xf]
      %v1913 = vld [vmem:[%s675 + $0x3c] sm:$0xf]
      %v1914 = vld [vmem:[%s678] sm:$0x1]
      %v1916 = vlaneseq
      %v1917 = vshrl.u32 %v1916, 7
      %v1918 = vsub.s32 0, %v1917
      %v1919 = vrot.slane %v1914, %v1918
      %v1937 = vunpack.c.l.b16 %v1898
      %v1938 = vunpack.c.l.b16 %v1899
      %v1939 = vunpack.c.l.b16 %v1900
      %v1940 = vunpack.c.l.b16 %v1901
      %v1941 = vunpack.c.l.b16 %v1902
      %v1942 = vunpack.c.l.b16 %v1903
      %v1943 = vunpack.c.l.b16 %v1904
      %v1944 = vunpack.c.l.b16 %v1905
      %v1945 = vunpack.c.l.b16 %v1906
      %v1946 = vunpack.c.l.b16 %v1907
      %v1947 = vunpack.c.l.b16 %v1908
      %v1948 = vunpack.c.l.b16 %v1909
      %v1949 = vunpack.c.l.b16 %v1910
      %v1950 = vunpack.c.l.b16 %v1911
      %v1951 = vunpack.c.l.b16 %v1912
      %v1952 = vunpack.c.l.b16 %v1913
      %v1953 = vpack.c.b16 %v1938, %v1937
      %v1954 = vpack.c.b16 %v1940, %v1939
      %v1955 = vpack.c.b16 %v1942, %v1941
      %v1956 = vpack.c.b16 %v1944, %v1943
      %v1957 = vpack.c.b16 %v1946, %v1945
      %v1958 = vpack.c.b16 %v1948, %v1947
      %v1959 = vpack.c.b16 %v1950, %v1949
      %v1960 = vpack.c.b16 %v1952, %v1951
      %1969 = vmatprep.subr.bf16.mxu0 0
      %1970 = vmatpush1.bf16.msra.mxu0 %v1953
      %1971 = vmatprep.subr.bf16.mxu0 0
      %1972 = vmatpush1.bf16.msra.mxu0 %v1954
      %1973 = vmatprep.subr.bf16.mxu0 0
      %1974 = vmatpush1.bf16.msra.mxu0 %v1955
      %1975 = vmatprep.subr.bf16.mxu0 0
      %1976 = vmatpush1.bf16.msra.mxu0 %v1956
      %1977 = vmatprep.subr.bf16.mxu0 0
      %1978 = vmatpush1.bf16.msra.mxu0 %v1957
      %1979 = vmatprep.subr.bf16.mxu0 0
      %1980 = vmatpush1.bf16.msra.mxu0 %v1958
      %1981 = vmatprep.subr.bf16.mxu0 0
      %1982 = vmatpush1.bf16.msra.mxu0 %v1959
      %1983 = vmatprep.subr.bf16.mxu0 0
      %1984 = vmatpush1.bf16.msra.mxu0 %v1960
      %1985 = vmatprep.subr.bf16.mxu0 0
      %1986 = vmatpush1.bf16.msra.mxu0 0
      %1987 = vmatprep.subr.bf16.mxu0 0
      %1988 = vmatpush1.bf16.msra.mxu0 0
      %1989 = vmatprep.subr.bf16.mxu0 0
      %1990 = vmatpush1.bf16.msra.mxu0 0
      %1991 = vmatprep.subr.bf16.mxu0 0
      %1992 = vmatpush1.bf16.msra.mxu0 0
      %1993 = vmatprep.subr.bf16.mxu0 0
      %1994 = vmatpush1.bf16.msra.mxu0 0
      %1995 = vmatprep.subr.bf16.mxu0 0
      %1996 = vmatpush1.bf16.msra.mxu0 0
      %1997 = vmatprep.subr.bf16.mxu0 0
      %1998 = vmatpush1.bf16.msra.mxu0 0
      %1999 = vmatprep.subr.bf16.mxu0 0
      %2000 = vmatpush1.bf16.msra.mxu0 0
      %2001 = vmatprep.mubr.bf16.mxu0 0
      %2002 = vmatmul.mubr.bf16.gmra.mrb[0].mxu0 %v1897
      %v2003 = vpop.f32.mrb[0].mxu0
      %v2004 = vadd.f32 %v1919, %v2003
      %v2005 = vpop.f32.mrb[0].mxu0
      %v2006 = vpop.f32.mrb[0].mxu0
      %v2007 = vadd.f32 %v1919, %v2006
      %v2008 = vpop.f32.mrb[0].mxu0
      %2009 = vdwg.mxu0
      %v2010 = vadd.f32 %v1825, %v2004
      %v2011 = vadd.f32 %v1826, %v2007
      %v2012 = vld [vmem:[%s659] sm:$0x1]
      %v2013 = vld [vmem:[%s662] sm:$0x1]
      %v2014 = vsel %vm718, %v2010, 0.0
      %2015 = vadd.xlane.f32.xlu0 %v2014
      %v2016 = vpop.xlane.xlu0 %2015
      %v2017 = vsel %vm718, %v2011, 0.0
      %2018 = vadd.xlane.f32.xlu0 %v2017
      %v2019 = vpop.xlane.xlu0 %2018
      %v2020 = vmul.f32 %v2016, %v1790
      %v2021 = vmul.f32 %v2019, %v1790
      %v2022 = vsub.f32 %v2010, %v2020
      %v2023 = vsub.f32 %v2011, %v2021
      %v2024 = vmul.f32 %v2022, %v2022
      %v2025 = vmul.f32 %v2023, %v2023
      %v2026 = vsel %vm718, %v2024, 0.0
      %2027 = vadd.xlane.f32.xlu0 %v2026
      %v2028 = vpop.xlane.xlu0 %2027
      %v2029 = vsel %vm718, %v2025, 0.0
      %2030 = vadd.xlane.f32.xlu0 %v2029
      %v2031 = vpop.xlane.xlu0 %2030
      %v2032 = vmul.f32 %v2028, %v1790
      %v2033 = vmul.f32 %v2031, %v1790
      %v2034 = vadd.f32 %v2032, 1e-05
      %v2035 = vadd.f32 %v2033, 1e-05
      %v2036 = vrsqrt.pop %v2034
      %v2037 = vrsqrt.pop %v2035
      %v2038 = vmul.f32 %v2022, %v2036
      %v2039 = vmul.f32 %v2023, %v2037
      %v2041 = vlaneseq
      %v2042 = vshrl.u32 %v2041, 7
      %v2043 = vsub.s32 0, %v2042
      %v2044 = vrot.slane %v2012, %v2043
      %v2046 = vmul.f32 %v2038, %v2044
      %v2047 = vmul.f32 %v2039, %v2044
      %v2049 = vlaneseq
      %v2050 = vshrl.u32 %v2049, 7
      %v2051 = vsub.s32 0, %v2050
      %v2052 = vrot.slane %v2013, %v2051
      %v2054 = vadd.f32 %v2046, %v2052
      %v2055 = vadd.f32 %v2047, %v2052
      %2056 = vst.msk [vmem:[#allocation2] sm:$0xff] %vm718, %v2054
      %2057 = vst.msk [vmem:[#allocation2 + $0x8] sm:$0xff] %vm718, %v2055
      %p2058 = scmp.eq.s32.totalorder %s27, 1
      // Predicated region
      $region89: #{transformer_forward.1} parent=83 // pred_check
        %p2059 = pneg %p2058
      $region90: #{transformer_forward.1} parent=83 // pred_check_branch
        %2061 = sbr.rel (%p2059) target = $region92
      $region91: #{transformer_forward.1} parent=83 // pred_region
        %v2062 = vpack.c.bf16 %v2055, %v2054
        %v2063 = vld [vmem:[%s14] sm:$0xf]
        %v2064 = vld [vmem:[%s14 + $0x4] sm:$0xf]
        %v2065 = vld [vmem:[%s14 + $0x8] sm:$0xf]
        %v2066 = vld [vmem:[%s14 + $0xc] sm:$0xf]
        %v2067 = vld [vmem:[%s15] sm:$0x1]
        %v2069 = vlaneseq
        %v2070 = vshrl.u32 %v2069, 7
        %v2071 = vsub.s32 0, %v2070
        %v2072 = vrot.slane %v2067, %v2071
        %v2078 = vunpack.c.l.b16 %v2063
        %v2079 = vunpack.c.l.b16 %v2064
        %v2080 = vunpack.c.l.b16 %v2065
        %v2081 = vunpack.c.l.b16 %v2066
        %v2082 = vpack.c.b16 %v2079, %v2078
        %v2083 = vpack.c.b16 %v2081, %v2080
        %v2087 = vsel %vm718, %v2062, 0
        %2089 = vmatprep.subr.bf16.mxu0 0
        %2090 = vmatpush1.bf16.msra.mxu0 %v2082
        %2091 = vmatprep.subr.bf16.mxu0 0
        %2092 = vmatpush1.bf16.msra.mxu0 %v2083
        %2093 = vmatprep.subr.bf16.mxu0 0
        %2094 = vmatpush1.bf16.msra.mxu0 0
        %2095 = vmatprep.subr.bf16.mxu0 0
        %2096 = vmatpush1.bf16.msra.mxu0 0
        %2097 = vmatprep.subr.bf16.mxu0 0
        %2098 = vmatpush1.bf16.msra.mxu0 0
        %2099 = vmatprep.subr.bf16.mxu0 0
        %2100 = vmatpush1.bf16.msra.mxu0 0
        %2101 = vmatprep.subr.bf16.mxu0 0
        %2102 = vmatpush1.bf16.msra.mxu0 0
        %2103 = vmatprep.subr.bf16.mxu0 0
        %2104 = vmatpush1.bf16.msra.mxu0 0
        %2105 = vmatprep.subr.bf16.mxu0 0
        %2106 = vmatpush1.bf16.msra.mxu0 0
        %2107 = vmatprep.subr.bf16.mxu0 0
        %2108 = vmatpush1.bf16.msra.mxu0 0
        %2109 = vmatprep.subr.bf16.mxu0 0
        %2110 = vmatpush1.bf16.msra.mxu0 0
        %2111 = vmatprep.subr.bf16.mxu0 0
        %2112 = vmatpush1.bf16.msra.mxu0 0
        %2113 = vmatprep.subr.bf16.mxu0 0
        %2114 = vmatpush1.bf16.msra.mxu0 0
        %2115 = vmatprep.subr.bf16.mxu0 0
        %2116 = vmatpush1.bf16.msra.mxu0 0
        %2117 = vmatprep.subr.bf16.mxu0 0
        %2118 = vmatpush1.bf16.msra.mxu0 0
        %2119 = vmatprep.subr.bf16.mxu0 0
        %2120 = vmatpush1.bf16.msra.mxu0 0
        %2121 = vmatprep.mubr.bf16.mxu0 0
        %2122 = vmatmul.mubr.bf16.gmra.mrb[0].mxu0 %v2087
        %v2123 = vpop.f32.mrb[0].mxu0
        %v2124 = vadd.f32 %v2072, %v2123
        %v2125 = vpop.f32.mrb[0].mxu0
        %v2126 = vpop.f32.mrb[0].mxu0
        %v2127 = vadd.f32 %v2072, %v2126
        %v2128 = vpop.f32.mrb[0].mxu0
        %2129 = vdwg.mxu0
        %2130 = vst [vmem:[%s16] sm:$0xff] %v2124
        %2131 = vst [vmem:[%s16 + $0x8] sm:$0xff] %v2127
      $region92: #{transformer_forward.1} parent=83 // pred_fallthru
        _
      // Predicated region
      $region93: #{transformer_forward.1} parent=83 // pred_check
        %p2132 = pneg %p436
      $region94: #{transformer_forward.1} parent=83 // pred_check_branch
        %2134 = sbr.rel (%p2132) target = $region96
      $region95: #{transformer_forward.1} parent=83 // pred_region
        _
      $region96: #{transformer_forward.1} parent=83 // pred_fallthru
        _
      // Predicated region
      $region97: #{transformer_forward.1} parent=83 // pred_check
        %p2135 = pneg %p436
      $region98: #{transformer_forward.1} parent=83 // pred_check_branch
        %2137 = sbr.rel (%p2135) target = $region100
      $region99: #{transformer_forward.1} parent=83 // pred_region
        _
      $region100: #{transformer_forward.1} parent=83 // pred_fallthru
        _
    $region84: #{transformer_forward.1} parent=5 // pred_fallthru
      _
    %p2138 = scmp.le.s32.totalorder 2, %s22
    // Predicated region
    $region101: #{transformer_forward.1} parent=5 // pred_check
      %p2139 = pneg %p2138
    $region102: #{transformer_forward.1} parent=5 // pred_check_branch
      %2141 = sbr.rel (%p2139) target = $region104
    $region103: #{transformer_forward.1} parent=5 // pred_region
      %s2142 = ssub.s32 %s22, 2
    $region104: #{transformer_forward.1} parent=5 // pred_fallthru
      _
  $region6: #{transformer_forward.1} parent=0 // loop_footer
    %s26 = sadd.s32 1, %s22
  $region7: #{transformer_forward.1} parent=0 // loop_footer_branch
    %21 = sbr.rel target = $region3
  $region8: #{transformer_forward.1} parent=0 // loop_exit
    _

</llo_original>
